<compile_context>
chip_gen: v7x
topology: tpu7x:2x2x1
jax: 0.10.0
libtpu: 0.0.40
codegen_flags: <defaults>
</compile_context>

<pallas_src>
import functools

import jax
import jax.numpy as jnp
import numpy as np
from jax import lax
from jax.experimental import pallas as pl
from jax.experimental.pallas import tpu as pltpu


def _resblock_kernel(xs_ref, rowmask_ref, s1_ref, h1_ref, g2_ref, beta2_ref,
                     cb2_ref, cbs_ref, B1_ref, BS_ref, T_ref, S_ref, B2_hbm_ref,
                     o_ref,
                     x1p_ref, x1cat_ref, x2p_ref, x2cat_ref, B2_vmem_ref, dma_sem,
                     *, RB, K1, K2, inv_cnt, eps):
    # xs_ref      : (RB+2, K1)   f32  raw input slab, zero rows at image/global pads
    # rowmask_ref : (RB+2, 1)    f32  1.0 at real image rows, 0.0 at pad rows
    # s1/h1       : (1, K1)      f32  BN1 scale/shift (wrapper batch stats), tiled on W
    # g2/beta2    : (1, Cout)    f32  BN2 gamma/beta
    # cb2/cbs     : (1, K2)      f32  conv2 / shortcut biases, tiled over W
    # B1          : (3*K1, K2)   bf16 banded conv1 weights (ky folded into rows)
    # BS          : (K1, K2)     bf16 block-diagonal 1x1 shortcut weights
    # T           : (K2, Cout)   f32  lane-block -> channel reduction matrix
    # S           : (Cout, K2)   f32  channel -> lane-block broadcast matrix (T^t)
    # B2_hbm_ref  : (3*K2, K2)   bf16 banded conv2 weights, left in HBM (pl.ANY)
    # o_ref       : (RB, K2)     f32  output slab (pad rows sliced off by the wrapper)
    # x1p/x2p     : (RB+2, K1/K2)     f32 scratch: conv inputs with zero pad rows
    # x1cat/x2cat : (RB, 3*K1 / 3*K2) bf16 scratch: ky-folded deep-K conv LHS
    # B2_vmem_ref : (3*K2, K2)   bf16 scratch: destination of the async B2 copy

    # ---- start the conv2-weight DMA immediately; it hides behind BN1+conv1+BN2 ------
    b2_copy = pltpu.make_async_copy(B2_hbm_ref, B2_vmem_ref, dma_sem)
    b2_copy.start()

    # ---- BN1 affine + ReLU (f32 VPU); re-zero pad rows; stage the slab in VMEM ------
    x1 = jnp.maximum(xs_ref[...] * s1_ref[...] + h1_ref[...], 0.0) * rowmask_ref[...]
    x1p_ref[...] = x1
    # fold the 3 kernel-row (ky) taps into the contraction: lane-band ky of the LHS is
    # the slab shifted down by ky rows (the bf16 cast happens at this staging store)
    for ky in range(3):
        x1cat_ref[:, pl.ds(ky * K1, K1)] = \
            x1p_ref[pl.ds(ky, RB), :].astype(jnp.bfloat16)

    # ---- conv1: one (RB, 3*K1) @ (3*K1, K2) bf16 matmul, f32 accumulate -------------
    # (conv1 bias omitted: a per-channel constant cancels in BN2's mean subtraction)
    y1 = jnp.dot(x1cat_ref[...], B1_ref[...], preferred_element_type=jnp.float32)

    # ---- BN2: one-pass batch statistics over the valid rows only (f32) --------------
    rm = rowmask_ref[pl.ds(1, RB), :]                     # (RB, 1)
    y1m = y1 * rm                                         # pad-row garbage -> 0
    # the two stats matmuls stay separate: fusing them (row-concat) would double the
    # live register footprint in the most pressure-heavy region for a negligible win
    ch_sum = jnp.sum(jnp.dot(y1m, T_ref[...], preferred_element_type=jnp.float32),
                     axis=0, keepdims=True)               # (1, Cout)
    ch_sq = jnp.sum(jnp.dot(y1m * y1m, T_ref[...],
                            preferred_element_type=jnp.float32),
                    axis=0, keepdims=True)                # (1, Cout)
    mean2 = ch_sum * inv_cnt
    var2 = jnp.maximum(ch_sq * inv_cnt - mean2 * mean2, 0.0)
    scale2 = g2_ref[...] * lax.rsqrt(var2 + eps)          # rsqrt -> EUP slot
    shift2 = beta2_ref[...] - mean2 * scale2
    aff = jnp.dot(jnp.concatenate([scale2, shift2], axis=0), S_ref[...],
                  preferred_element_type=jnp.float32)     # (2, K2), tiled over W
    x2 = jnp.maximum(y1m * aff[0:1, :] + aff[1:2, :], 0.0) * rm

    # ---- stage the conv2 LHS: row-padded slab, then ky-folded lane bands (bf16) -----
    zrow = jnp.zeros((1, K2), jnp.float32)
    x2p_ref[pl.ds(0, 1), :] = zrow
    x2p_ref[pl.ds(RB + 1, 1), :] = zrow
    x2p_ref[pl.ds(1, RB), :] = x2
    for ky in range(3):
        x2cat_ref[:, pl.ds(ky * K2, K2)] = \
            x2p_ref[pl.ds(ky, RB), :].astype(jnp.bfloat16)

    # ---- conv2 (wait for its weights only now) + 1x1 shortcut + residual add --------
    b2_copy.wait()
    out = jnp.dot(x2cat_ref[...], B2_vmem_ref[...], preferred_element_type=jnp.float32)
    out = out + jnp.dot(xs_ref[pl.ds(1, RB), :].astype(jnp.bfloat16), BS_ref[...],
                        preferred_element_type=jnp.float32)
    o_ref[...] = (out + cb2_ref[...] + cbs_ref[...]).astype(o_ref.dtype)


def init_params(key, inc, outc):
    ks = jax.random.split(key, 10)
    f = lambda k, shape: (0.1 * jax.random.normal(k, shape)).astype(jnp.float32)
    return dict(
        conv1_w=f(ks[0], (outc, inc, 3, 3)),  conv1_b=f(ks[1], (outc,)),
        conv2_w=f(ks[2], (outc, outc, 3, 3)), conv2_b=f(ks[3], (outc,)),
        convs_w=f(ks[4], (outc, inc, 1, 1)),  convs_b=f(ks[5], (outc,)),
        bn1_g=1.0 + f(ks[6], (inc,)),  bn1_b=f(ks[7], (inc,)),
        bn2_g=1.0 + f(ks[8], (outc,)), bn2_b=f(ks[9], (outc,)),
    )


def resblock_gen_forward(x_nchw, params, upsample=True):
    N, Cin, H, W = x_nchw.shape
    Cout = params["conv1_w"].shape[0]
    eps = 1e-5

    x_nhwc = jnp.transpose(x_nchw, (0, 2, 3, 1)).astype(jnp.float32)

    # BN1 batch statistics on the pre-upsample input (nearest-neighbour upsample
    # leaves per-channel mean / biased var unchanged) -> per-channel affine.
    m1 = jnp.mean(x_nhwc, axis=(0, 1, 2))
    v1 = jnp.mean(jnp.square(x_nhwc - m1), axis=(0, 1, 2))
    scale1 = params["bn1_g"].astype(jnp.float32) / jnp.sqrt(v1 + eps)
    shift1 = params["bn1_b"].astype(jnp.float32) - m1 * scale1

    if upsample:
        # TODO(synk): fold the nearest upsample + zero padding into the kernel (row
        # duplication + width replication folded into the banded weights) to remove
        # the wrapper-side layout HLOs and cut the xs HBM read 4x.
        x_nhwc = jnp.repeat(jnp.repeat(x_nhwc, 2, axis=1), 2, axis=2)   # nearest
    H2, W2 = x_nhwc.shape[1], x_nhwc.shape[2]
    Hp = H2 + 2                       # one zero pad row above and below each image
    RB = N * Hp
    RE = RB + 2                       # + one extra global zero row top & bottom
    K1 = W2 * Cin                     # lane width of the input slab (128 here)
    K2 = W2 * Cout                    # lane width of intermediates / output (256)

    # ---- layout glue: row-slab (rows = image rows, lanes = (w, channel)) -----------
    x_pad = jnp.pad(x_nhwc, ((0, 0), (1, 1), (0, 0), (0, 0)))
    xs = jnp.pad(x_pad.reshape(RB, K1), ((1, 1), (0, 0)))               # (RE, K1)

    rowmask = np.zeros((RE, 1), np.float32)
    for n in range(N):
        rowmask[n * Hp + 2: n * Hp + 2 + H2, 0] = 1.0
    rowmask = jnp.asarray(rowmask)

    # ---- weight glue: banded matrices (kx taps + width zero-pad folded into the
    #      band; ky taps stacked along the contraction rows), stored as bf16 ---------
    P = np.zeros((3, W2, W2), np.float32)
    for kx in range(3):
        for w in range(W2):
            c = w + kx - 1
            if 0 <= c < W2:
                P[kx, w, c] = 1.0
    w1 = jnp.transpose(params["conv1_w"], (2, 3, 1, 0)).astype(jnp.float32)
    w2 = jnp.transpose(params["conv2_w"], (2, 3, 1, 0)).astype(jnp.float32)
    B1 = jnp.einsum("xwq,yxio->yqiwo", P, w1).reshape(3 * K1, K2).astype(jnp.bfloat16)
    B2 = jnp.einsum("xwq,yxio->yqiwo", P, w2).reshape(3 * K2, K2).astype(jnp.bfloat16)

    if upsample:
        ws = jnp.transpose(params["convs_w"][:, :, 0, 0], (1, 0)).astype(jnp.float32)
        bs = params["convs_b"].astype(jnp.float32)
    else:
        assert Cin == Cout, "identity shortcut needs inc == outc"
        ws = jnp.eye(Cin, dtype=jnp.float32)
        bs = jnp.zeros((Cout,), jnp.float32)
    BS = jnp.einsum("wq,io->qiwo", jnp.eye(W2, dtype=jnp.float32),
                    ws).reshape(K1, K2).astype(jnp.bfloat16)

    T = jnp.asarray(np.tile(np.eye(Cout, dtype=np.float32), (W2, 1)))   # (K2, Cout)
    S = jnp.asarray(np.tile(np.eye(Cout, dtype=np.float32), (1, W2)))   # (Cout, K2)

    tile_w = lambda v, c: jnp.tile(jnp.reshape(v, (1, c)).astype(jnp.float32), (1, W2))
    s1t = tile_w(scale1, Cin)
    h1t = tile_w(shift1, Cin)
    cb2 = tile_w(params["conv2_b"], Cout)
    cbs = tile_w(bs, Cout)
    g2 = params["bn2_g"].reshape(1, Cout).astype(jnp.float32)
    beta2 = params["bn2_b"].reshape(1, Cout).astype(jnp.float32)

    args = (xs, rowmask, s1t, h1t, g2, beta2, cb2, cbs, B1, BS, T, S, B2)

    kernel = functools.partial(_resblock_kernel, RB=RB, K1=K1, K2=K2,
                               inv_cnt=1.0 / float(N * H2 * W2), eps=eps)

    flops = 2 * RB * K2 * (4 * K1 + 3 * K2) + 2 * (2 * RB * K2 * Cout) + 12 * RB * K2
    bytes_accessed = sum(int(np.prod(a.shape)) * a.dtype.itemsize for a in args) \
                     + RB * K2 * 4
    cost = pl.CostEstimate(flops=flops, transcendentals=Cout,
                           bytes_accessed=bytes_accessed)

    def full_spec(a):
        nd = a.ndim
        return pl.BlockSpec(a.shape, lambda i, nd=nd: (0,) * nd)

    in_specs = [full_spec(a) for a in args[:-1]]
    in_specs.append(pl.BlockSpec(memory_space=pl.ANY))   # B2: kernel DMAs it itself

    # NOTE: the whole working set is well under 1 MiB, so a single grid point / VMEM
    # tile is right at this size.  BN2's batch statistics couple all rows, so a
    # row-tiled grid (or a 2-wide "parallel" column split of conv2+shortcut for the
    # two v7x TensorCores) needs a two-phase stats pass -- planned for larger batches.
    out2d = pl.pallas_call(
        kernel,
        out_shape=jax.ShapeDtypeStruct((RB, K2), jnp.float32),
        grid_spec=pltpu.PrefetchScalarGridSpec(
            num_scalar_prefetch=0,
            grid=(1,),
            in_specs=in_specs,
            out_specs=pl.BlockSpec((RB, K2), lambda i: (0, 0)),
            scratch_shapes=[
                pltpu.VMEM((RE, K1), jnp.float32),        # x1p  (padded BN1 slab)
                pltpu.VMEM((RB, 3 * K1), jnp.bfloat16),   # x1cat (deep-K conv1 LHS)
                pltpu.VMEM((RE, K2), jnp.float32),        # x2p  (padded conv2 input)
                pltpu.VMEM((RB, 3 * K2), jnp.bfloat16),   # x2cat (deep-K conv2 LHS)
                pltpu.VMEM((3 * K2, K2), jnp.bfloat16),   # B2 DMA destination
                pltpu.SemaphoreType.DMA(()),              # B2 copy semaphore
            ]),
        compiler_params=pltpu.CompilerParams(
            dimension_semantics=("arbitrary",),
            vmem_limit_bytes=32 * 1024 * 1024),
        cost_estimate=cost,
    )(*args)

    out = out2d.reshape(N, Hp, W2, Cout)[:, 1:H2 + 1]       # drop pad rows
    return jnp.transpose(out, (0, 3, 1, 2))                 # back to NCHW


def resblock_gen_reference(x, params, upsample=True, eps=1e-5):
    """Pure-JAX reference mirroring the PyTorch forward (NCHW)."""
    def bn(t, g, b):
        m = jnp.mean(t, axis=(0, 2, 3), keepdims=True)
        v = jnp.mean((t - m) ** 2, axis=(0, 2, 3), keepdims=True)
        return (t - m) / jnp.sqrt(v + eps) * g.reshape(1, -1, 1, 1) \
               + b.reshape(1, -1, 1, 1)

    def conv(t, w, b, p):
        y = lax.conv_general_dilated(
            t, w, window_strides=(1, 1), padding=[(p, p), (p, p)],
            dimension_numbers=("NCHW", "OIHW", "NCHW"),
            precision=lax.Precision.HIGHEST)
        return y + b.reshape(1, -1, 1, 1)

    up = lambda t: jnp.repeat(jnp.repeat(t, 2, axis=2), 2, axis=3)

    h = jax.nn.relu(bn(x, params["bn1_g"], params["bn1_b"]))
    if upsample:
        h = up(h)
    h = conv(h, params["conv1_w"], params["conv1_b"], 1)
    h = jax.nn.relu(bn(h, params["bn2_g"], params["bn2_b"]))
    h = conv(h, params["conv2_w"], params["conv2_b"], 1)
    s = x
    if upsample:
        s = up(s)
        s = conv(s, params["convs_w"], params["convs_b"], 0)
    return h + s


if __name__ == "__main__":
    key = jax.random.PRNGKey(0)
    kx, kp = jax.random.split(key)

    N, inc, outc, H, W = 2, 4, 8, 16, 16
    x = jax.random.normal(kx, (N, inc, H, W), dtype=jnp.float32)
    params = init_params(kp, inc, outc)

    out = resblock_gen_forward(x, params, upsample=True)
    out = jax.block_until_ready(out)

    ref = resblock_gen_reference(x, params, upsample=True)
    assert out.shape == (N, outc, 2 * H, 2 * W), out.shape
    err = float(jnp.max(jnp.abs(out - ref)))
    # bf16 MXU operands (f32 accumulate) -> slightly looser tolerance than pure f32.
    if not bool(jnp.allclose(out, ref, rtol=5e-2, atol=5e-2)):
        raise AssertionError(f"kernel/reference mismatch, max abs err = {err}")

    print("KERNEL_OK")
</pallas_src>

<mosaic_0001>
module attributes {stable_mosaic.version = 11 : i64} {
  func.func @_resblock_kernel(%arg0: i32, %arg1: memref<70x128xf32, #tpu.memory_space<vmem>>, %arg2: memref<70x1xf32, #tpu.memory_space<vmem>>, %arg3: memref<1x128xf32, #tpu.memory_space<vmem>>, %arg4: memref<1x128xf32, #tpu.memory_space<vmem>>, %arg5: memref<1x8xf32, #tpu.memory_space<vmem>>, %arg6: memref<1x8xf32, #tpu.memory_space<vmem>>, %arg7: memref<1x256xf32, #tpu.memory_space<vmem>>, %arg8: memref<1x256xf32, #tpu.memory_space<vmem>>, %arg9: memref<384x256xbf16, #tpu.memory_space<vmem>>, %arg10: memref<128x256xbf16, #tpu.memory_space<vmem>>, %arg11: memref<256x8xf32, #tpu.memory_space<vmem>>, %arg12: memref<8x256xf32, #tpu.memory_space<vmem>>, %arg13: memref<768x256xbf16, #tpu.memory_space<any>>, %arg14: memref<68x256xf32, #tpu.memory_space<vmem>>, %arg15: memref<70x128xf32, #tpu.memory_space<vmem>>, %arg16: memref<68x384xbf16, #tpu.memory_space<vmem>>, %arg17: memref<70x256xf32, #tpu.memory_space<vmem>>, %arg18: memref<68x768xbf16, #tpu.memory_space<vmem>>, %arg19: memref<768x256xbf16, #tpu.memory_space<vmem>>, %arg20: memref<!tpu.dma_semaphore, #tpu.memory_space<semaphore_mem>>) attributes {dimension_semantics = [#tpu.dimension_semantics<arbitrary>], iteration_bounds = array<i64: 1>, scalar_prefetch = 0 : i64, scratch_operands = 6 : i64, tpu.core_type = #tpu.core_type<tc>, window_params = [{pipeline_mode = #tpu.pipeline_mode<synchronous>, transform_indices = @transform_0, window_bounds = array<i64: 70, 128>}, {pipeline_mode = #tpu.pipeline_mode<synchronous>, transform_indices = @transform_1, window_bounds = array<i64: 70, 1>}, {pipeline_mode = #tpu.pipeline_mode<synchronous>, transform_indices = @transform_2, window_bounds = array<i64: 1, 128>}, {pipeline_mode = #tpu.pipeline_mode<synchronous>, transform_indices = @transform_3, window_bounds = array<i64: 1, 128>}, {pipeline_mode = #tpu.pipeline_mode<synchronous>, transform_indices = @transform_4, window_bounds = array<i64: 1, 8>}, {pipeline_mode = #tpu.pipeline_mode<synchronous>, transform_indices = @transform_5, window_bounds = array<i64: 1, 8>}, {pipeline_mode = #tpu.pipeline_mode<synchronous>, transform_indices = @transform_6, window_bounds = array<i64: 1, 256>}, {pipeline_mode = #tpu.pipeline_mode<synchronous>, transform_indices = @transform_7, window_bounds = array<i64: 1, 256>}, {pipeline_mode = #tpu.pipeline_mode<synchronous>, transform_indices = @transform_8, window_bounds = array<i64: 384, 256>}, {pipeline_mode = #tpu.pipeline_mode<synchronous>, transform_indices = @transform_9, window_bounds = array<i64: 128, 256>}, {pipeline_mode = #tpu.pipeline_mode<synchronous>, transform_indices = @transform_10, window_bounds = array<i64: 256, 8>}, {pipeline_mode = #tpu.pipeline_mode<synchronous>, transform_indices = @transform_11, window_bounds = array<i64: 8, 256>}, {}, {pipeline_mode = #tpu.pipeline_mode<synchronous>, transform_indices = @transform_13, window_bounds = array<i64: 68, 256>}]} {
    tpu.enqueue_dma source(%arg13 : memref<768x256xbf16, #tpu.memory_space<any>>) target(%arg19 : memref<768x256xbf16, #tpu.memory_space<vmem>>) target_semaphore(%arg20 : memref<!tpu.dma_semaphore, #tpu.memory_space<semaphore_mem>>)
    %c0 = arith.constant 0 : index
    %c0_0 = arith.constant 0 : index
    %0 = vector.load %arg1[%c0, %c0_0] : memref<70x128xf32, #tpu.memory_space<vmem>>, vector<70x128xf32>
    %c0_1 = arith.constant 0 : index
    %c0_2 = arith.constant 0 : index
    %1 = vector.load %arg3[%c0_1, %c0_2] : memref<1x128xf32, #tpu.memory_space<vmem>>, vector<1x128xf32>
    %2 = vector.broadcast %1 : vector<1x128xf32> to vector<70x128xf32>
    %3 = arith.mulf %0, %2 : vector<70x128xf32>
    %c0_3 = arith.constant 0 : index
    %c0_4 = arith.constant 0 : index
    %4 = vector.load %arg4[%c0_3, %c0_4] : memref<1x128xf32, #tpu.memory_space<vmem>>, vector<1x128xf32>
    %5 = vector.broadcast %4 : vector<1x128xf32> to vector<70x128xf32>
    %6 = arith.addf %3, %5 : vector<70x128xf32>
    %cst = arith.constant 0.000000e+00 : f32
    %7 = vector.broadcast %cst : f32 to vector<70x128xf32>
    %8 = arith.maximumf %6, %7 : vector<70x128xf32>
    %c0_5 = arith.constant 0 : index
    %c0_6 = arith.constant 0 : index
    %9 = vector.load %arg2[%c0_5, %c0_6] : memref<70x1xf32, #tpu.memory_space<vmem>>, vector<70x1xf32>
    %10 = vector.broadcast %9 : vector<70x1xf32> to vector<70x128xf32>
    %11 = arith.mulf %8, %10 : vector<70x128xf32>
    %c0_7 = arith.constant 0 : index
    %c0_8 = arith.constant 0 : index
    %12 = vector.load %arg15[%c0_7, %c0_8] : memref<70x128xf32, #tpu.memory_space<vmem>>, vector<70x128xf32>
    tpu.vector_store %arg15[%c0_7, %c0_8], %11 {strides = array<i32>} : memref<70x128xf32, #tpu.memory_space<vmem>>, vector<70x128xf32>,
    %c0_9 = arith.constant 0 : index
    %c0_10 = arith.constant 0 : index
    %13 = vector.load %arg15[%c0_9, %c0_10] : memref<70x128xf32, #tpu.memory_space<vmem>>, vector<68x128xf32>
    %14 = arith.truncf %13 : vector<68x128xf32> to vector<68x128xbf16>
    %c0_11 = arith.constant 0 : index
    %c0_12 = arith.constant 0 : index
    %15 = vector.load %arg16[%c0_11, %c0_12] : memref<68x384xbf16, #tpu.memory_space<vmem>>, vector<68x128xbf16>
    tpu.vector_store %arg16[%c0_11, %c0_12], %14 {strides = array<i32>} : memref<68x384xbf16, #tpu.memory_space<vmem>>, vector<68x128xbf16>,
    %c1 = arith.constant 1 : index
    %c0_13 = arith.constant 0 : index
    %16 = vector.load %arg15[%c1, %c0_13] : memref<70x128xf32, #tpu.memory_space<vmem>>, vector<68x128xf32>
    %17 = arith.truncf %16 : vector<68x128xf32> to vector<68x128xbf16>
    %c0_14 = arith.constant 0 : index
    %c128 = arith.constant 128 : index
    %18 = vector.load %arg16[%c0_14, %c128] : memref<68x384xbf16, #tpu.memory_space<vmem>>, vector<68x128xbf16>
    tpu.vector_store %arg16[%c0_14, %c128], %17 {strides = array<i32>} : memref<68x384xbf16, #tpu.memory_space<vmem>>, vector<68x128xbf16>,
    %c2 = arith.constant 2 : index
    %c0_15 = arith.constant 0 : index
    %19 = vector.load %arg15[%c2, %c0_15] : memref<70x128xf32, #tpu.memory_space<vmem>>, vector<68x128xf32>
    %20 = arith.truncf %19 : vector<68x128xf32> to vector<68x128xbf16>
    %c0_16 = arith.constant 0 : index
    %c256 = arith.constant 256 : index
    %21 = vector.load %arg16[%c0_16, %c256] : memref<68x384xbf16, #tpu.memory_space<vmem>>, vector<68x128xbf16>
    tpu.vector_store %arg16[%c0_16, %c256], %20 {strides = array<i32>} : memref<68x384xbf16, #tpu.memory_space<vmem>>, vector<68x128xbf16>,
    %c0_17 = arith.constant 0 : index
    %c0_18 = arith.constant 0 : index
    %22 = vector.load %arg16[%c0_17, %c0_18] : memref<68x384xbf16, #tpu.memory_space<vmem>>, vector<68x384xbf16>
    %c0_19 = arith.constant 0 : index
    %c0_20 = arith.constant 0 : index
    %23 = vector.load %arg9[%c0_19, %c0_20] : memref<384x256xbf16, #tpu.memory_space<vmem>>, vector<384x256xbf16>
    %cst_21 = arith.constant dense<0.000000e+00> : vector<68x256xf32>
    %24 = tpu.matmul %22, %23, %cst_21 {dimension_numbers = #tpu.dot_dimension_numbers<[1], [0], [0], [1], [0, 0, 1, 1], [], []>} : vector<68x384xbf16>, vector<384x256xbf16>, vector<68x256xf32> -> vector<68x256xf32>
    %c1_22 = arith.constant 1 : index
    %c0_23 = arith.constant 0 : index
    %25 = vector.load %arg2[%c1_22, %c0_23] : memref<70x1xf32, #tpu.memory_space<vmem>>, vector<68x1xf32>
    %26 = vector.broadcast %25 : vector<68x1xf32> to vector<68x256xf32>
    %27 = arith.mulf %24, %26 : vector<68x256xf32>
    %c0_24 = arith.constant 0 : index
    %c0_25 = arith.constant 0 : index
    %28 = vector.load %arg11[%c0_24, %c0_25] : memref<256x8xf32, #tpu.memory_space<vmem>>, vector<256x8xf32>
    %cst_26 = arith.constant dense<0.000000e+00> : vector<68x8xf32>
    %29 = tpu.matmul %27, %28, %cst_26 {dimension_numbers = #tpu.dot_dimension_numbers<[1], [0], [0], [1], [0, 0, 1, 1], [], []>} : vector<68x256xf32>, vector<256x8xf32>, vector<68x8xf32> -> vector<68x8xf32>
    %cst_27 = arith.constant dense<0.000000e+00> : vector<8xf32>
    %30 = vector.multi_reduction <add>, %29, %cst_27 [0] : vector<68x8xf32> to vector<8xf32>
    %31 = vector.shape_cast %30 : vector<8xf32> to vector<1x8xf32>
    %32 = arith.mulf %27, %27 : vector<68x256xf32>
    %c0_28 = arith.constant 0 : index
    %c0_29 = arith.constant 0 : index
    %33 = vector.load %arg11[%c0_28, %c0_29] : memref<256x8xf32, #tpu.memory_space<vmem>>, vector<256x8xf32>
    %cst_30 = arith.constant dense<0.000000e+00> : vector<68x8xf32>
    %34 = tpu.matmul %32, %33, %cst_30 {dimension_numbers = #tpu.dot_dimension_numbers<[1], [0], [0], [1], [0, 0, 1, 1], [], []>} : vector<68x256xf32>, vector<256x8xf32>, vector<68x8xf32> -> vector<68x8xf32>
    %cst_31 = arith.constant dense<0.000000e+00> : vector<8xf32>
    %35 = vector.multi_reduction <add>, %34, %cst_31 [0] : vector<68x8xf32> to vector<8xf32>
    %36 = vector.shape_cast %35 : vector<8xf32> to vector<1x8xf32>
    %cst_32 = arith.constant 4.8828125E-4 : f32
    %37 = vector.broadcast %cst_32 : f32 to vector<1x8xf32>
    %38 = arith.mulf %31, %37 : vector<1x8xf32>
    %cst_33 = arith.constant 4.8828125E-4 : f32
    %39 = vector.broadcast %cst_33 : f32 to vector<1x8xf32>
    %40 = arith.mulf %36, %39 : vector<1x8xf32>
    %41 = arith.mulf %38, %38 : vector<1x8xf32>
    %42 = arith.subf %40, %41 : vector<1x8xf32>
    %cst_34 = arith.constant 0.000000e+00 : f32
    %43 = vector.broadcast %cst_34 : f32 to vector<1x8xf32>
    %44 = arith.maximumf %42, %43 : vector<1x8xf32>
    %c0_35 = arith.constant 0 : index
    %c0_36 = arith.constant 0 : index
    %45 = vector.load %arg5[%c0_35, %c0_36] : memref<1x8xf32, #tpu.memory_space<vmem>>, vector<1x8xf32>
    %cst_37 = arith.constant 9.99999974E-6 : f32
    %46 = vector.broadcast %cst_37 : f32 to vector<1x8xf32>
    %47 = arith.addf %44, %46 : vector<1x8xf32>
    %48 = math.rsqrt %47 : vector<1x8xf32>
    %49 = arith.mulf %45, %48 : vector<1x8xf32>
    %c0_38 = arith.constant 0 : index
    %c0_39 = arith.constant 0 : index
    %50 = vector.load %arg6[%c0_38, %c0_39] : memref<1x8xf32, #tpu.memory_space<vmem>>, vector<1x8xf32>
    %51 = arith.mulf %38, %49 : vector<1x8xf32>
    %52 = arith.subf %50, %51 : vector<1x8xf32>
    %53 = tpu.concatenate %49, %52 in 0 : vector<1x8xf32>, vector<1x8xf32> -> vector<2x8xf32>
    %c0_40 = arith.constant 0 : index
    %c0_41 = arith.constant 0 : index
    %54 = vector.load %arg12[%c0_40, %c0_41] : memref<8x256xf32, #tpu.memory_space<vmem>>, vector<8x256xf32>
    %cst_42 = arith.constant dense<0.000000e+00> : vector<2x256xf32>
    %55 = tpu.matmul %53, %54, %cst_42 {dimension_numbers = #tpu.dot_dimension_numbers<[1], [0], [0], [1], [0, 0, 1, 1], [], []>} : vector<2x8xf32>, vector<8x256xf32>, vector<2x256xf32> -> vector<2x256xf32>
    %56 = vector.extract_strided_slice %55 {offsets = [0, 0], sizes = [1, 256], strides = [1, 1]} : vector<2x256xf32> to vector<1x256xf32>
    %57 = vector.broadcast %56 : vector<1x256xf32> to vector<68x256xf32>
    %58 = arith.mulf %27, %57 : vector<68x256xf32>
    %59 = vector.extract_strided_slice %55 {offsets = [1, 0], sizes = [1, 256], strides = [1, 1]} : vector<2x256xf32> to vector<1x256xf32>
    %60 = vector.broadcast %59 : vector<1x256xf32> to vector<68x256xf32>
    %61 = arith.addf %58, %60 : vector<68x256xf32>
    %cst_43 = arith.constant 0.000000e+00 : f32
    %62 = vector.broadcast %cst_43 : f32 to vector<68x256xf32>
    %63 = arith.maximumf %61, %62 : vector<68x256xf32>
    %64 = vector.broadcast %25 : vector<68x1xf32> to vector<68x256xf32>
    %65 = arith.mulf %63, %64 : vector<68x256xf32>
    %cst_44 = arith.constant 0.000000e+00 : f32
    %66 = vector.broadcast %cst_44 : f32 to vector<1x256xf32>
    %c0_45 = arith.constant 0 : index
    %c0_46 = arith.constant 0 : index
    %67 = vector.load %arg17[%c0_45, %c0_46] : memref<70x256xf32, #tpu.memory_space<vmem>>, vector<1x256xf32>
    tpu.vector_store %arg17[%c0_45, %c0_46], %66 {strides = array<i32>} : memref<70x256xf32, #tpu.memory_space<vmem>>, vector<1x256xf32>,
    %c69 = arith.constant 69 : index
    %c0_47 = arith.constant 0 : index
    %68 = vector.load %arg17[%c69, %c0_47] : memref<70x256xf32, #tpu.memory_space<vmem>>, vector<1x256xf32>
    tpu.vector_store %arg17[%c69, %c0_47], %66 {strides = array<i32>} : memref<70x256xf32, #tpu.memory_space<vmem>>, vector<1x256xf32>,
    %c1_48 = arith.constant 1 : index
    %c0_49 = arith.constant 0 : index
    %69 = vector.load %arg17[%c1_48, %c0_49] : memref<70x256xf32, #tpu.memory_space<vmem>>, vector<68x256xf32>
    tpu.vector_store %arg17[%c1_48, %c0_49], %65 {strides = array<i32>} : memref<70x256xf32, #tpu.memory_space<vmem>>, vector<68x256xf32>,
    %c0_50 = arith.constant 0 : index
    %c0_51 = arith.constant 0 : index
    %70 = vector.load %arg17[%c0_50, %c0_51] : memref<70x256xf32, #tpu.memory_space<vmem>>, vector<68x256xf32>
    %71 = arith.truncf %70 : vector<68x256xf32> to vector<68x256xbf16>
    %c0_52 = arith.constant 0 : index
    %c0_53 = arith.constant 0 : index
    %72 = vector.load %arg18[%c0_52, %c0_53] : memref<68x768xbf16, #tpu.memory_space<vmem>>, vector<68x256xbf16>
    tpu.vector_store %arg18[%c0_52, %c0_53], %71 {strides = array<i32>} : memref<68x768xbf16, #tpu.memory_space<vmem>>, vector<68x256xbf16>,
    %c1_54 = arith.constant 1 : index
    %c0_55 = arith.constant 0 : index
    %73 = vector.load %arg17[%c1_54, %c0_55] : memref<70x256xf32, #tpu.memory_space<vmem>>, vector<68x256xf32>
    %74 = arith.truncf %73 : vector<68x256xf32> to vector<68x256xbf16>
    %c0_56 = arith.constant 0 : index
    %c256_57 = arith.constant 256 : index
    %75 = vector.load %arg18[%c0_56, %c256_57] : memref<68x768xbf16, #tpu.memory_space<vmem>>, vector<68x256xbf16>
    tpu.vector_store %arg18[%c0_56, %c256_57], %74 {strides = array<i32>} : memref<68x768xbf16, #tpu.memory_space<vmem>>, vector<68x256xbf16>,
    %c2_58 = arith.constant 2 : index
    %c0_59 = arith.constant 0 : index
    %76 = vector.load %arg17[%c2_58, %c0_59] : memref<70x256xf32, #tpu.memory_space<vmem>>, vector<68x256xf32>
    %77 = arith.truncf %76 : vector<68x256xf32> to vector<68x256xbf16>
    %c0_60 = arith.constant 0 : index
    %c512 = arith.constant 512 : index
    %78 = vector.load %arg18[%c0_60, %c512] : memref<68x768xbf16, #tpu.memory_space<vmem>>, vector<68x256xbf16>
    tpu.vector_store %arg18[%c0_60, %c512], %77 {strides = array<i32>} : memref<68x768xbf16, #tpu.memory_space<vmem>>, vector<68x256xbf16>,
    tpu.wait_dma2 semaphore(%arg20 : memref<!tpu.dma_semaphore, #tpu.memory_space<semaphore_mem>>) src(%arg13 : memref<768x256xbf16, #tpu.memory_space<any>>) dst(%arg19 : memref<768x256xbf16, #tpu.memory_space<vmem>>)
    %c0_61 = arith.constant 0 : index
    %c0_62 = arith.constant 0 : index
    %79 = vector.load %arg18[%c0_61, %c0_62] : memref<68x768xbf16, #tpu.memory_space<vmem>>, vector<68x768xbf16>
    %c0_63 = arith.constant 0 : index
    %c0_64 = arith.constant 0 : index
    %80 = vector.load %arg19[%c0_63, %c0_64] : memref<768x256xbf16, #tpu.memory_space<vmem>>, vector<768x256xbf16>
    %cst_65 = arith.constant dense<0.000000e+00> : vector<68x256xf32>
    %81 = tpu.matmul %79, %80, %cst_65 {dimension_numbers = #tpu.dot_dimension_numbers<[1], [0], [0], [1], [0, 0, 1, 1], [], []>} : vector<68x768xbf16>, vector<768x256xbf16>, vector<68x256xf32> -> vector<68x256xf32>
    %c1_66 = arith.constant 1 : index
    %c0_67 = arith.constant 0 : index
    %82 = vector.load %arg1[%c1_66, %c0_67] : memref<70x128xf32, #tpu.memory_space<vmem>>, vector<68x128xf32>
    %83 = arith.truncf %82 : vector<68x128xf32> to vector<68x128xbf16>
    %c0_68 = arith.constant 0 : index
    %c0_69 = arith.constant 0 : index
    %84 = vector.load %arg10[%c0_68, %c0_69] : memref<128x256xbf16, #tpu.memory_space<vmem>>, vector<128x256xbf16>
    %cst_70 = arith.constant dense<0.000000e+00> : vector<68x256xf32>
    %85 = tpu.matmul %83, %84, %cst_70 {dimension_numbers = #tpu.dot_dimension_numbers<[1], [0], [0], [1], [0, 0, 1, 1], [], []>} : vector<68x128xbf16>, vector<128x256xbf16>, vector<68x256xf32> -> vector<68x256xf32>
    %86 = arith.addf %81, %85 : vector<68x256xf32>
    %c0_71 = arith.constant 0 : index
    %c0_72 = arith.constant 0 : index
    %87 = vector.load %arg7[%c0_71, %c0_72] : memref<1x256xf32, #tpu.memory_space<vmem>>, vector<1x256xf32>
    %88 = vector.broadcast %87 : vector<1x256xf32> to vector<68x256xf32>
    %89 = arith.addf %86, %88 : vector<68x256xf32>
    %c0_73 = arith.constant 0 : index
    %c0_74 = arith.constant 0 : index
    %90 = vector.load %arg8[%c0_73, %c0_74] : memref<1x256xf32, #tpu.memory_space<vmem>>, vector<1x256xf32>
    %91 = vector.broadcast %90 : vector<1x256xf32> to vector<68x256xf32>
    %92 = arith.addf %89, %91 : vector<68x256xf32>
    %c0_75 = arith.constant 0 : index
    %c0_76 = arith.constant 0 : index
    %93 = vector.load %arg14[%c0_75, %c0_76] : memref<68x256xf32, #tpu.memory_space<vmem>>, vector<68x256xf32>
    tpu.vector_store %arg14[%c0_75, %c0_76], %92 {strides = array<i32>} : memref<68x256xf32, #tpu.memory_space<vmem>>, vector<68x256xf32>,
    return
  }
  func.func @transform_0(%arg0: i32) -> (i32, i32) {
    %c0_i32 = arith.constant 0 : i32
    %c0_i32_0 = arith.constant 0 : i32
    %c0_i32_1 = arith.constant 0 : i32
    return %c0_i32, %c0_i32_0 : i32, i32
  }
  func.func @transform_1(%arg0: i32) -> (i32, i32) {
    %c0_i32 = arith.constant 0 : i32
    %c0_i32_0 = arith.constant 0 : i32
    %c0_i32_1 = arith.constant 0 : i32
    return %c0_i32, %c0_i32_0 : i32, i32
  }
  func.func @transform_2(%arg0: i32) -> (i32, i32) {
    %c0_i32 = arith.constant 0 : i32
    %c0_i32_0 = arith.constant 0 : i32
    %c0_i32_1 = arith.constant 0 : i32
    return %c0_i32, %c0_i32_0 : i32, i32
  }
  func.func @transform_3(%arg0: i32) -> (i32, i32) {
    %c0_i32 = arith.constant 0 : i32
    %c0_i32_0 = arith.constant 0 : i32
    %c0_i32_1 = arith.constant 0 : i32
    return %c0_i32, %c0_i32_0 : i32, i32
  }
  func.func @transform_4(%arg0: i32) -> (i32, i32) {
    %c0_i32 = arith.constant 0 : i32
    %c0_i32_0 = arith.constant 0 : i32
    %c0_i32_1 = arith.constant 0 : i32
    return %c0_i32, %c0_i32_0 : i32, i32
  }
  func.func @transform_5(%arg0: i32) -> (i32, i32) {
    %c0_i32 = arith.constant 0 : i32
    %c0_i32_0 = arith.constant 0 : i32
    %c0_i32_1 = arith.constant 0 : i32
    return %c0_i32, %c0_i32_0 : i32, i32
  }
  func.func @transform_6(%arg0: i32) -> (i32, i32) {
    %c0_i32 = arith.constant 0 : i32
    %c0_i32_0 = arith.constant 0 : i32
    %c0_i32_1 = arith.constant 0 : i32
    return %c0_i32, %c0_i32_0 : i32, i32
  }
  func.func @transform_7(%arg0: i32) -> (i32, i32) {
    %c0_i32 = arith.constant 0 : i32
    %c0_i32_0 = arith.constant 0 : i32
    %c0_i32_1 = arith.constant 0 : i32
    return %c0_i32, %c0_i32_0 : i32, i32
  }
  func.func @transform_8(%arg0: i32) -> (i32, i32) {
    %c0_i32 = arith.constant 0 : i32
    %c0_i32_0 = arith.constant 0 : i32
    %c0_i32_1 = arith.constant 0 : i32
    return %c0_i32, %c0_i32_0 : i32, i32
  }
  func.func @transform_9(%arg0: i32) -> (i32, i32) {
    %c0_i32 = arith.constant 0 : i32
    %c0_i32_0 = arith.constant 0 : i32
    %c0_i32_1 = arith.constant 0 : i32
    return %c0_i32, %c0_i32_0 : i32, i32
  }
  func.func @transform_10(%arg0: i32) -> (i32, i32) {
    %c0_i32 = arith.constant 0 : i32
    %c0_i32_0 = arith.constant 0 : i32
    %c0_i32_1 = arith.constant 0 : i32
    return %c0_i32, %c0_i32_0 : i32, i32
  }
  func.func @transform_11(%arg0: i32) -> (i32, i32) {
    %c0_i32 = arith.constant 0 : i32
    %c0_i32_0 = arith.constant 0 : i32
    %c0_i32_1 = arith.constant 0 : i32
    return %c0_i32, %c0_i32_0 : i32, i32
  }
  func.func @transform_13(%arg0: i32) -> (i32, i32) {
    %c0_i32 = arith.constant 0 : i32
    %c0_i32_0 = arith.constant 0 : i32
    %c0_i32_1 = arith.constant 0 : i32
    return %c0_i32, %c0_i32_0 : i32, i32
  }
}

</mosaic_0001>

<llo_original>
// kernel: tpu_custom_call.1
$region0: #{tpu_custom_call.1}
  #allocation0 [shape = 'u32[]', space=smem, size = 0x4, offset = 0x4, fixed_abs, tag = 'smem constant byte address 0x4 - core index']
  #allocation1 [shape = 'u32[144,128]{1,0:T(1,128)}', space=vmem, size = 0x12000, scoped, tag = 'internal scratch']
  #allocation2 [shape = 'f32[70,128]{1,0:T(8,128)}', space=vmem, size = 0x9000, scoped, tag = 'scratch operand']
  #allocation3 [shape = 'bf16[68,384]{1,0:T(8,128)(2,1)}', space=vmem, size = 0xd800, scoped, tag = 'scratch operand']
  #allocation4 [shape = 'f32[70,256]{1,0:T(8,128)}', space=vmem, size = 0x12000, scoped, tag = 'scratch operand']
  #allocation5 [shape = 'bf16[68,768]{1,0:T(8,128)(2,1)}', space=vmem, size = 0x1b000, scoped, tag = 'scratch operand']
  #allocation6 [shape = 'bf16[768,256]{1,0:T(16,128)(2,1)}', space=vmem, size = 0x60000, scoped, tag = 'scratch operand']
  #allocation7 [shape = 's32[1]{0}', space=sflag, size = 0x4, scoped, tag = 'scratch operand']
  #allocation12 [shape = 's32[]', space=sflag, size = 0x4, offset = 0, fixed_abs, tag = 'sflag constant byte address 0x0 - dummy sync flag']
  %s0 = inlined_call_operand.vmem [shape: f32[70,128], index: 0, kind: input, shape index: {}]
  %s1 = inlined_call_operand.vmem [shape: f32[70,1], index: 1, kind: input, shape index: {}]
  %s2 = inlined_call_operand.vmem [shape: f32[1,128], index: 2, kind: input, shape index: {}]
  %s3 = inlined_call_operand.vmem [shape: f32[1,128], index: 3, kind: input, shape index: {}]
  %s4 = inlined_call_operand.vmem [shape: f32[1,8], index: 4, kind: input, shape index: {}]
  %s5 = inlined_call_operand.vmem [shape: f32[1,8], index: 5, kind: input, shape index: {}]
  %s6 = inlined_call_operand.vmem [shape: f32[1,256], index: 6, kind: input, shape index: {}]
  %s7 = inlined_call_operand.vmem [shape: f32[1,256], index: 7, kind: input, shape index: {}]
  %s8 = inlined_call_operand.hbm [shape: bf16[384,256], index: 8, kind: input, shape index: {}]
  %s9 = inlined_call_operand.vmem [shape: bf16[128,256], index: 9, kind: input, shape index: {}]
  %s10 = inlined_call_operand.vmem [shape: f32[256,8], index: 10, kind: input, shape index: {}]
  %s11 = inlined_call_operand.vmem [shape: f32[8,256], index: 11, kind: input, shape index: {}]
  %s12 = inlined_call_operand.hbm [shape: bf16[768,256], index: 12, kind: input, shape index: {}]
  %s13 = inlined_call_operand.hbm [shape: f32[68,256], index: 13, kind: output, shape index: {}]
  %s14 = sld [smem:[#allocation0]]
  $region62: #{tpu_custom_call.1} parent=0
    _
  %s16 = ssub.s32 1, %s14
  %s17 = scalar_select 0, %s16, %s14
  $region1: #{tpu_custom_call.1} parent=0
    #allocation8 [shape = 'u8[196608]{0}', space=vmem, size = 0x30000, scoped, tag = 'input window, operand 8, single buffered']
    #allocation9 [shape = 's32[1]{0}', space=sflag, size = 0x4, scoped, tag = 'scoped memory for tpu_custom_call.1']
    #allocation10 [shape = 's32[1]{0}', space=sflag, size = 0x4, scoped, tag = 'scoped memory for tpu_custom_call.1']
    #allocation11 [shape = 'u8[73728]{0}', space=vmem, size = 0x12000, scoped, tag = 'output window, operand 0, single buffered']
    #allocation13 [shape = 'u32[9]{0}', space=smem, size = 0x24, scoped, tag = 'DMA stride descriptor']
    %18 = vsyncpa [#allocation9], 0
    %19 = vsyncpa [#allocation10], 0
    // Predicated region
    $region2: #{tpu_custom_call.1} parent=1 // pred_check
      _
    $region3: #{tpu_custom_call.1} parent=1 // pred_check_branch
      %21 = sbr.rel (0) target = $region5
    $region4: #{tpu_custom_call.1} parent=1 // pred_region
      _
    $region5: #{tpu_custom_call.1} parent=1 // pred_fallthru
      _
    // Predicated region
    $region6: #{tpu_custom_call.1} parent=1 // pred_check
      _
    $region7: #{tpu_custom_call.1} parent=1 // pred_check_branch
      %23 = sbr.rel (0) target = $region9
    $region8: #{tpu_custom_call.1} parent=1 // pred_region
      _
    $region9: #{tpu_custom_call.1} parent=1 // pred_fallthru
      _
    // Predicated region
    $region10: #{tpu_custom_call.1} parent=1 // pred_check
      _
    $region11: #{tpu_custom_call.1} parent=1 // pred_check_branch
      %25 = sbr.rel (0) target = $region13
    $region12: #{tpu_custom_call.1} parent=1 // pred_region
      _
    $region13: #{tpu_custom_call.1} parent=1 // pred_fallthru
      _
    // Predicated region
    $region14: #{tpu_custom_call.1} parent=1 // pred_check
      _
    $region15: #{tpu_custom_call.1} parent=1 // pred_check_branch
      %27 = sbr.rel (0) target = $region17
    $region16: #{tpu_custom_call.1} parent=1 // pred_region
      _
    $region17: #{tpu_custom_call.1} parent=1 // pred_fallthru
      _
    // Predicated region
    $region18: #{tpu_custom_call.1} parent=1 // pred_check
      _
    $region19: #{tpu_custom_call.1} parent=1 // pred_check_branch
      %29 = sbr.rel (0) target = $region21
    $region20: #{tpu_custom_call.1} parent=1 // pred_region
      _
    $region21: #{tpu_custom_call.1} parent=1 // pred_fallthru
      _
    // Predicated region
    $region22: #{tpu_custom_call.1} parent=1 // pred_check
      _
    $region23: #{tpu_custom_call.1} parent=1 // pred_check_branch
      %31 = sbr.rel (0) target = $region25
    $region24: #{tpu_custom_call.1} parent=1 // pred_region
      _
    $region25: #{tpu_custom_call.1} parent=1 // pred_fallthru
      _
    // Predicated region
    $region26: #{tpu_custom_call.1} parent=1 // pred_check
      _
    $region27: #{tpu_custom_call.1} parent=1 // pred_check_branch
      %33 = sbr.rel (0) target = $region29
    $region28: #{tpu_custom_call.1} parent=1 // pred_region
      _
    $region29: #{tpu_custom_call.1} parent=1 // pred_fallthru
      _
    // Predicated region
    $region30: #{tpu_custom_call.1} parent=1 // pred_check
      _
    $region31: #{tpu_custom_call.1} parent=1 // pred_check_branch
      %35 = sbr.rel (0) target = $region33
    $region32: #{tpu_custom_call.1} parent=1 // pred_region
      _
    $region33: #{tpu_custom_call.1} parent=1 // pred_fallthru
      _
    // Predicated region
    $region34: #{tpu_custom_call.1} parent=1 // pred_check
      _
    $region35: #{tpu_custom_call.1} parent=1 // pred_check_branch
      %37 = sbr.rel (0) target = $region37
    $region36: #{tpu_custom_call.1} parent=1 // pred_region
      %s39 = ssub.s32 6144, 6144
      %40 = vsyncadd [#allocation9], %s39
      %s41 = sshll.u32 [#allocation8], 4
      %s42 = int_to_ptr.vmem [resolvable:$true] %s41
      %47 = dma.hbm_to_vmem [thread:$0]  %s8, 6144, %s42, [#allocation9], 128, 128, 8
    $region37: #{tpu_custom_call.1} parent=1 // pred_fallthru
      _
    // Predicated region
    $region38: #{tpu_custom_call.1} parent=1 // pred_check
      _
    $region39: #{tpu_custom_call.1} parent=1 // pred_check_branch
      %49 = sbr.rel (0) target = $region41
    $region40: #{tpu_custom_call.1} parent=1 // pred_region
      _
    $region41: #{tpu_custom_call.1} parent=1 // pred_fallthru
      _
    // Predicated region
    $region42: #{tpu_custom_call.1} parent=1 // pred_check
      _
    $region43: #{tpu_custom_call.1} parent=1 // pred_check_branch
      %51 = sbr.rel (0) target = $region45
    $region44: #{tpu_custom_call.1} parent=1 // pred_region
      _
    $region45: #{tpu_custom_call.1} parent=1 // pred_fallthru
      _
    // Predicated region
    $region46: #{tpu_custom_call.1} parent=1 // pred_check
      _
    $region47: #{tpu_custom_call.1} parent=1 // pred_check_branch
      %53 = sbr.rel (0) target = $region49
    $region48: #{tpu_custom_call.1} parent=1 // pred_region
      _
    $region49: #{tpu_custom_call.1} parent=1 // pred_fallthru
      _
    // Predicated region
    $region50: #{tpu_custom_call.1} parent=1 // pred_check
      _
    $region51: #{tpu_custom_call.1} parent=1 // pred_check_branch
      %55 = sbr.rel (0) target = $region53
    $region52: #{tpu_custom_call.1} parent=1 // pred_region
      %56 = dma.done [#allocation9], 6144
    $region53: #{tpu_custom_call.1} parent=1 // pred_fallthru
      _
    %s59 = sshll.u32 1, 14
    %s60 = sxor.u32 4294967295, %s59
    %s62 = sld [smem:[#allocation0]]
    %s63 = sadd.s32 2, %s62
    %s65 = sshll.u32 7, 26
    %s66 = sxor.u32 4294967295, %s65
    %s67 = sand.u32 0, %s66
    %s68 = sshll.u32 %s63, 26
    %s69 = sor.u32 %s67, %s68
    %s70 = sshll.u32 [#allocation6], 4
    %s71 = int_to_ptr.vmem [resolvable:$true] %s70
    %74 = sst [smem:[#allocation13]] 256
    %s75 = scalar_lea.smem [#allocation13], 1
    %76 = sst [smem:[%s75]] 256
    %s77 = scalar_lea.smem [#allocation13], 2
    %78 = sst [smem:[%s77]] 2
    %s79 = scalar_lea.smem [#allocation13], 3
    %80 = sst [smem:[%s79]] 64
    %s81 = scalar_lea.smem [#allocation13], 4
    %82 = sst [smem:[%s81]] 128
    %s83 = scalar_lea.smem [#allocation13], 5
    %84 = sst [smem:[%s83]] 2
    %s85 = scalar_lea.smem [#allocation13], 6
    %86 = sst [smem:[%s85]] 128
    %s87 = scalar_lea.smem [#allocation13], 7
    %88 = sst [smem:[%s87]] 64
    %s89 = scalar_lea.smem [#allocation13], 8
    %90 = sst [smem:[%s89]] 4
    %92 = dma.general %s12, 12288, %s71, [#allocation7], [#allocation12], [#allocation13], %s69, 0
    %v93 = vld [vmem:[%s0] sm:$0xff]
    %v94 = vld [vmem:[%s0 + $0x8] sm:$0xff]
    %v95 = vld [vmem:[%s0 + $0x10] sm:$0xff]
    %v96 = vld [vmem:[%s0 + $0x18] sm:$0xff]
    %v97 = vld [vmem:[%s0 + $0x20] sm:$0xff]
    %v98 = vld [vmem:[%s0 + $0x28] sm:$0xff]
    %v99 = vld [vmem:[%s0 + $0x30] sm:$0xff]
    %v100 = vld [vmem:[%s0 + $0x38] sm:$0xff]
    %v101 = vld [vmem:[%s0 + $0x40] sm:$0x3f]
    %v102 = vld [vmem:[%s2] sm:$0x1]
    %v104 = vlaneseq
    %v105 = vshrl.u32 %v104, 7
    %v106 = vsub.s32 0, %v105
    %v107 = vrot.slane %v102, %v106
    %v109 = vmul.f32 %v93, %v107
    %v110 = vmul.f32 %v94, %v107
    %v111 = vmul.f32 %v95, %v107
    %v112 = vmul.f32 %v96, %v107
    %v113 = vmul.f32 %v97, %v107
    %v114 = vmul.f32 %v98, %v107
    %v115 = vmul.f32 %v99, %v107
    %v116 = vmul.f32 %v100, %v107
    %v117 = vmul.f32 %v101, %v107
    %v118 = vld [vmem:[%s3] sm:$0x1]
    %v120 = vlaneseq
    %v121 = vshrl.u32 %v120, 7
    %v122 = vsub.s32 0, %v121
    %v123 = vrot.slane %v118, %v122
    %v125 = vadd.f32 %v109, %v123
    %v126 = vadd.f32 %v110, %v123
    %v127 = vadd.f32 %v111, %v123
    %v128 = vadd.f32 %v112, %v123
    %v129 = vadd.f32 %v113, %v123
    %v130 = vadd.f32 %v114, %v123
    %v131 = vadd.f32 %v115, %v123
    %v132 = vadd.f32 %v116, %v123
    %v133 = vadd.f32 %v117, %v123
    %v134 = vmax.f32 %v125, 0.0
    %v135 = vmax.f32 %v126, 0.0
    %v136 = vmax.f32 %v127, 0.0
    %v137 = vmax.f32 %v128, 0.0
    %v138 = vmax.f32 %v129, 0.0
    %v139 = vmax.f32 %v130, 0.0
    %v140 = vmax.f32 %v131, 0.0
    %v141 = vmax.f32 %v132, 0.0
    %v142 = vmax.f32 %v133, 0.0
    %v143 = vld [vmem:[%s1] sm:$0xff]
    %v144 = vld [vmem:[%s1 + $0x8] sm:$0xff]
    %v145 = vld [vmem:[%s1 + $0x10] sm:$0xff]
    %v146 = vld [vmem:[%s1 + $0x18] sm:$0xff]
    %v147 = vld [vmem:[%s1 + $0x20] sm:$0xff]
    %v148 = vld [vmem:[%s1 + $0x28] sm:$0xff]
    %v149 = vld [vmem:[%s1 + $0x30] sm:$0xff]
    %v150 = vld [vmem:[%s1 + $0x38] sm:$0xff]
    %v151 = vld [vmem:[%s1 + $0x40] sm:$0x3f]
    %153 = vset.pattern.permute.xlu0 0
    %154 = vperm.xlu0 %153, %v143
    %v155 = vpop.permute.xlu0 %154
    %158 = vset.pattern.permute.xlu0 0
    %159 = vperm.xlu0 %158, %v144
    %v160 = vpop.permute.xlu0 %159
    %163 = vset.pattern.permute.xlu0 0
    %164 = vperm.xlu0 %163, %v145
    %v165 = vpop.permute.xlu0 %164
    %168 = vset.pattern.permute.xlu0 0
    %169 = vperm.xlu0 %168, %v146
    %v170 = vpop.permute.xlu0 %169
    %173 = vset.pattern.permute.xlu0 0
    %174 = vperm.xlu0 %173, %v147
    %v175 = vpop.permute.xlu0 %174
    %178 = vset.pattern.permute.xlu0 0
    %179 = vperm.xlu0 %178, %v148
    %v180 = vpop.permute.xlu0 %179
    %183 = vset.pattern.permute.xlu0 0
    %184 = vperm.xlu0 %183, %v149
    %v185 = vpop.permute.xlu0 %184
    %188 = vset.pattern.permute.xlu0 0
    %189 = vperm.xlu0 %188, %v150
    %v190 = vpop.permute.xlu0 %189
    %193 = vset.pattern.permute.xlu0 0
    %194 = vperm.xlu0 %193, %v151
    %v195 = vpop.permute.xlu0 %194
    %v197 = vmul.f32 %v134, %v155
    %v198 = vmul.f32 %v135, %v160
    %v199 = vmul.f32 %v136, %v165
    %v200 = vmul.f32 %v137, %v170
    %v201 = vmul.f32 %v138, %v175
    %v202 = vmul.f32 %v139, %v180
    %v203 = vmul.f32 %v140, %v185
    %v204 = vmul.f32 %v141, %v190
    %v205 = vmul.f32 %v142, %v195
    %206 = vst [vmem:[#allocation2] sm:$0xff] %v197
    %207 = vst [vmem:[#allocation2 + $0x8] sm:$0xff] %v198
    %208 = vst [vmem:[#allocation2 + $0x10] sm:$0xff] %v199
    %209 = vst [vmem:[#allocation2 + $0x18] sm:$0xff] %v200
    %210 = vst [vmem:[#allocation2 + $0x20] sm:$0xff] %v201
    %211 = vst [vmem:[#allocation2 + $0x28] sm:$0xff] %v202
    %212 = vst [vmem:[#allocation2 + $0x30] sm:$0xff] %v203
    %213 = vst [vmem:[#allocation2 + $0x38] sm:$0xff] %v204
    %214 = vst [vmem:[#allocation2 + $0x40] sm:$0x3f] %v205
    %v215 = vld [vmem:[#allocation2] sm:$0xff]
    %v216 = vld [vmem:[#allocation2 + $0x8] sm:$0xff]
    %v217 = vld [vmem:[#allocation2 + $0x10] sm:$0xff]
    %v218 = vld [vmem:[#allocation2 + $0x18] sm:$0xff]
    %v219 = vld [vmem:[#allocation2 + $0x20] sm:$0xff]
    %v220 = vld [vmem:[#allocation2 + $0x28] sm:$0xff]
    %v221 = vld [vmem:[#allocation2 + $0x30] sm:$0xff]
    %v222 = vld [vmem:[#allocation2 + $0x38] sm:$0xff]
    %v223 = vld [vmem:[#allocation2 + $0x40] sm:$0xf]
    %v224 = vpack.c.bf16 %v216, %v215
    %v225 = vpack.c.bf16 %v218, %v217
    %v226 = vpack.c.bf16 %v220, %v219
    %v227 = vpack.c.bf16 %v222, %v221
    %v228 = vpack.c.bf16 %v223, %v223
    %v234 = vunpack.c.l.b16 %v224
    %v235 = vunpack.c.h.b16 %v224
    %v236 = vunpack.c.l.b16 %v225
    %v237 = vunpack.c.h.b16 %v225
    %v238 = vunpack.c.l.b16 %v226
    %v239 = vunpack.c.h.b16 %v226
    %v240 = vunpack.c.l.b16 %v227
    %v241 = vunpack.c.h.b16 %v227
    %v242 = vunpack.c.l.b16 %v228
    %v243 = vpack.c.b16 %v234, %v234
    %v244 = vpack.c.b16 %v235, %v235
    %v245 = vpack.c.b16 %v236, %v236
    %v246 = vpack.c.b16 %v237, %v237
    %v247 = vpack.c.b16 %v238, %v238
    %v248 = vpack.c.b16 %v239, %v239
    %v249 = vpack.c.b16 %v240, %v240
    %v250 = vpack.c.b16 %v241, %v241
    %v251 = vpack.c.b16 %v242, %v242
    %261 = vst [vmem:[#allocation3] sm:$0xf] %v243
    %262 = vst [vmem:[#allocation3 + $0xc] sm:$0xf] %v244
    %263 = vst [vmem:[#allocation3 + $0x18] sm:$0xf] %v245
    %264 = vst [vmem:[#allocation3 + $0x24] sm:$0xf] %v246
    %265 = vst [vmem:[#allocation3 + $0x30] sm:$0xf] %v247
    %266 = vst [vmem:[#allocation3 + $0x3c] sm:$0xf] %v248
    %267 = vst [vmem:[#allocation3 + $0x48] sm:$0xf] %v249
    %268 = vst [vmem:[#allocation3 + $0x54] sm:$0xf] %v250
    %269 = vst [vmem:[#allocation3 + $0x60] sm:$0x3] %v251
    %v270 = vld [vmem:[#allocation2 + $0x1] sm:$0xff]
    %v271 = vld [vmem:[#allocation2 + $0x9] sm:$0xff]
    %v272 = vld [vmem:[#allocation2 + $0x11] sm:$0xff]
    %v273 = vld [vmem:[#allocation2 + $0x19] sm:$0xff]
    %v274 = vld [vmem:[#allocation2 + $0x21] sm:$0xff]
    %v275 = vld [vmem:[#allocation2 + $0x29] sm:$0xff]
    %v276 = vld [vmem:[#allocation2 + $0x31] sm:$0xff]
    %v277 = vld [vmem:[#allocation2 + $0x39] sm:$0xff]
    %v278 = vld [vmem:[#allocation2 + $0x41] sm:$0xf]
    %v279 = vpack.c.bf16 %v271, %v270
    %v280 = vpack.c.bf16 %v273, %v272
    %v281 = vpack.c.bf16 %v275, %v274
    %v282 = vpack.c.bf16 %v277, %v276
    %v283 = vpack.c.bf16 %v278, %v278
    %v289 = vunpack.c.l.b16 %v279
    %v290 = vunpack.c.h.b16 %v279
    %v291 = vunpack.c.l.b16 %v280
    %v292 = vunpack.c.h.b16 %v280
    %v293 = vunpack.c.l.b16 %v281
    %v294 = vunpack.c.h.b16 %v281
    %v295 = vunpack.c.l.b16 %v282
    %v296 = vunpack.c.h.b16 %v282
    %v297 = vunpack.c.l.b16 %v283
    %v298 = vpack.c.b16 %v289, %v289
    %v299 = vpack.c.b16 %v290, %v290
    %v300 = vpack.c.b16 %v291, %v291
    %v301 = vpack.c.b16 %v292, %v292
    %v302 = vpack.c.b16 %v293, %v293
    %v303 = vpack.c.b16 %v294, %v294
    %v304 = vpack.c.b16 %v295, %v295
    %v305 = vpack.c.b16 %v296, %v296
    %v306 = vpack.c.b16 %v297, %v297
    %316 = vst [vmem:[#allocation3 + $0x4] sm:$0xf] %v298
    %317 = vst [vmem:[#allocation3 + $0x10] sm:$0xf] %v299
    %318 = vst [vmem:[#allocation3 + $0x1c] sm:$0xf] %v300
    %319 = vst [vmem:[#allocation3 + $0x28] sm:$0xf] %v301
    %320 = vst [vmem:[#allocation3 + $0x34] sm:$0xf] %v302
    %321 = vst [vmem:[#allocation3 + $0x40] sm:$0xf] %v303
    %322 = vst [vmem:[#allocation3 + $0x4c] sm:$0xf] %v304
    %323 = vst [vmem:[#allocation3 + $0x58] sm:$0xf] %v305
    %324 = vst [vmem:[#allocation3 + $0x64] sm:$0x3] %v306
    %v325 = vld [vmem:[#allocation2 + $0x2] sm:$0xff]
    %v326 = vld [vmem:[#allocation2 + $0xa] sm:$0xff]
    %v327 = vld [vmem:[#allocation2 + $0x12] sm:$0xff]
    %v328 = vld [vmem:[#allocation2 + $0x1a] sm:$0xff]
    %v329 = vld [vmem:[#allocation2 + $0x22] sm:$0xff]
    %v330 = vld [vmem:[#allocation2 + $0x2a] sm:$0xff]
    %v331 = vld [vmem:[#allocation2 + $0x32] sm:$0xff]
    %v332 = vld [vmem:[#allocation2 + $0x3a] sm:$0xff]
    %v333 = vld [vmem:[#allocation2 + $0x42] sm:$0xf]
    %v334 = vpack.c.bf16 %v326, %v325
    %v335 = vpack.c.bf16 %v328, %v327
    %v336 = vpack.c.bf16 %v330, %v329
    %v337 = vpack.c.bf16 %v332, %v331
    %v338 = vpack.c.bf16 %v333, %v333
    %v344 = vunpack.c.l.b16 %v334
    %v345 = vunpack.c.h.b16 %v334
    %v346 = vunpack.c.l.b16 %v335
    %v347 = vunpack.c.h.b16 %v335
    %v348 = vunpack.c.l.b16 %v336
    %v349 = vunpack.c.h.b16 %v336
    %v350 = vunpack.c.l.b16 %v337
    %v351 = vunpack.c.h.b16 %v337
    %v352 = vunpack.c.l.b16 %v338
    %v353 = vpack.c.b16 %v344, %v344
    %v354 = vpack.c.b16 %v345, %v345
    %v355 = vpack.c.b16 %v346, %v346
    %v356 = vpack.c.b16 %v347, %v347
    %v357 = vpack.c.b16 %v348, %v348
    %v358 = vpack.c.b16 %v349, %v349
    %v359 = vpack.c.b16 %v350, %v350
    %v360 = vpack.c.b16 %v351, %v351
    %v361 = vpack.c.b16 %v352, %v352
    %371 = vst [vmem:[#allocation3 + $0x8] sm:$0xf] %v353
    %372 = vst [vmem:[#allocation3 + $0x14] sm:$0xf] %v354
    %373 = vst [vmem:[#allocation3 + $0x20] sm:$0xf] %v355
    %374 = vst [vmem:[#allocation3 + $0x2c] sm:$0xf] %v356
    %375 = vst [vmem:[#allocation3 + $0x38] sm:$0xf] %v357
    %376 = vst [vmem:[#allocation3 + $0x44] sm:$0xf] %v358
    %377 = vst [vmem:[#allocation3 + $0x50] sm:$0xf] %v359
    %378 = vst [vmem:[#allocation3 + $0x5c] sm:$0xf] %v360
    %379 = vst [vmem:[#allocation3 + $0x68] sm:$0x3] %v361
    %v380 = vld [vmem:[#allocation3] sm:$0xff]
    %v381 = vld [vmem:[#allocation3 + $0x8] sm:$0xf]
    %v382 = vld [vmem:[#allocation3 + $0xc] sm:$0xff]
    %v383 = vld [vmem:[#allocation3 + $0x14] sm:$0xf]
    %v384 = vld [vmem:[#allocation3 + $0x18] sm:$0xff]
    %v385 = vld [vmem:[#allocation3 + $0x20] sm:$0xf]
    %v386 = vld [vmem:[#allocation3 + $0x24] sm:$0xff]
    %v387 = vld [vmem:[#allocation3 + $0x2c] sm:$0xf]
    %v388 = vld [vmem:[#allocation3 + $0x30] sm:$0xff]
    %v389 = vld [vmem:[#allocation3 + $0x38] sm:$0xf]
    %v390 = vld [vmem:[#allocation3 + $0x3c] sm:$0xff]
    %v391 = vld [vmem:[#allocation3 + $0x44] sm:$0xf]
    %v392 = vld [vmem:[#allocation3 + $0x48] sm:$0xff]
    %v393 = vld [vmem:[#allocation3 + $0x50] sm:$0xf]
    %v394 = vld [vmem:[#allocation3 + $0x54] sm:$0xff]
    %v395 = vld [vmem:[#allocation3 + $0x5c] sm:$0xf]
    %v396 = vld [vmem:[#allocation3 + $0x60] sm:$0x33]
    %v397 = vld [vmem:[#allocation3 + $0x68] sm:$0x3]
    %v398 = vld [vmem:[#allocation8] sm:$0xff]
    %v399 = vld [vmem:[#allocation8 + $0x8] sm:$0xff]
    %v400 = vld [vmem:[#allocation8 + $0x10] sm:$0xff]
    %v401 = vld [vmem:[#allocation8 + $0x18] sm:$0xff]
    %v402 = vld [vmem:[#allocation8 + $0x20] sm:$0xff]
    %v403 = vld [vmem:[#allocation8 + $0x28] sm:$0xff]
    %v404 = vld [vmem:[#allocation8 + $0x30] sm:$0xff]
    %v405 = vld [vmem:[#allocation8 + $0x38] sm:$0xff]
    %v406 = vld [vmem:[#allocation8 + $0x40] sm:$0xff]
    %v407 = vld [vmem:[#allocation8 + $0x48] sm:$0xff]
    %v408 = vld [vmem:[#allocation8 + $0x50] sm:$0xff]
    %v409 = vld [vmem:[#allocation8 + $0x58] sm:$0xff]
    %v410 = vld [vmem:[#allocation8 + $0x60] sm:$0xff]
    %v411 = vld [vmem:[#allocation8 + $0x68] sm:$0xff]
    %v412 = vld [vmem:[#allocation8 + $0x70] sm:$0xff]
    %v413 = vld [vmem:[#allocation8 + $0x78] sm:$0xff]
    %v414 = vld [vmem:[#allocation8 + $0x80] sm:$0xff]
    %v415 = vld [vmem:[#allocation8 + $0x88] sm:$0xff]
    %v416 = vld [vmem:[#allocation8 + $0x90] sm:$0xff]
    %v417 = vld [vmem:[#allocation8 + $0x98] sm:$0xff]
    %v418 = vld [vmem:[#allocation8 + $0xa0] sm:$0xff]
    %v419 = vld [vmem:[#allocation8 + $0xa8] sm:$0xff]
    %v420 = vld [vmem:[#allocation8 + $0xb0] sm:$0xff]
    %v421 = vld [vmem:[#allocation8 + $0xb8] sm:$0xff]
    %v422 = vld [vmem:[#allocation8 + $0xc0] sm:$0xff]
    %v423 = vld [vmem:[#allocation8 + $0xc8] sm:$0xff]
    %v424 = vld [vmem:[#allocation8 + $0xd0] sm:$0xff]
    %v425 = vld [vmem:[#allocation8 + $0xd8] sm:$0xff]
    %v426 = vld [vmem:[#allocation8 + $0xe0] sm:$0xff]
    %v427 = vld [vmem:[#allocation8 + $0xe8] sm:$0xff]
    %v428 = vld [vmem:[#allocation8 + $0xf0] sm:$0xff]
    %v429 = vld [vmem:[#allocation8 + $0xf8] sm:$0xff]
    %v430 = vld [vmem:[#allocation8 + $0x100] sm:$0xff]
    %v431 = vld [vmem:[#allocation8 + $0x108] sm:$0xff]
    %v432 = vld [vmem:[#allocation8 + $0x110] sm:$0xff]
    %v433 = vld [vmem:[#allocation8 + $0x118] sm:$0xff]
    %v434 = vld [vmem:[#allocation8 + $0x120] sm:$0xff]
    %v435 = vld [vmem:[#allocation8 + $0x128] sm:$0xff]
    %v436 = vld [vmem:[#allocation8 + $0x130] sm:$0xff]
    %v437 = vld [vmem:[#allocation8 + $0x138] sm:$0xff]
    %v438 = vld [vmem:[#allocation8 + $0x140] sm:$0xff]
    %v439 = vld [vmem:[#allocation8 + $0x148] sm:$0xff]
    %v440 = vld [vmem:[#allocation8 + $0x150] sm:$0xff]
    %v441 = vld [vmem:[#allocation8 + $0x158] sm:$0xff]
    %v442 = vld [vmem:[#allocation8 + $0x160] sm:$0xff]
    %v443 = vld [vmem:[#allocation8 + $0x168] sm:$0xff]
    %v444 = vld [vmem:[#allocation8 + $0x170] sm:$0xff]
    %v445 = vld [vmem:[#allocation8 + $0x178] sm:$0xff]
    %v464 = vunpack.c.l.b16 %v380
    %v465 = vunpack.c.h.b16 %v380
    %v466 = vunpack.c.l.b16 %v381
    %v467 = vunpack.c.l.b16 %v382
    %v468 = vunpack.c.h.b16 %v382
    %v469 = vunpack.c.l.b16 %v383
    %v470 = vunpack.c.l.b16 %v384
    %v471 = vunpack.c.h.b16 %v384
    %v472 = vunpack.c.l.b16 %v385
    %v473 = vunpack.c.l.b16 %v386
    %v474 = vunpack.c.h.b16 %v386
    %v475 = vunpack.c.l.b16 %v387
    %v476 = vunpack.c.l.b16 %v388
    %v477 = vunpack.c.h.b16 %v388
    %v478 = vunpack.c.l.b16 %v389
    %v479 = vunpack.c.l.b16 %v390
    %v480 = vunpack.c.h.b16 %v390
    %v481 = vunpack.c.l.b16 %v391
    %v482 = vunpack.c.l.b16 %v392
    %v483 = vunpack.c.h.b16 %v392
    %v484 = vunpack.c.l.b16 %v393
    %v485 = vunpack.c.l.b16 %v394
    %v486 = vunpack.c.h.b16 %v394
    %v487 = vunpack.c.l.b16 %v395
    %v488 = vunpack.c.l.b16 %v396
    %v489 = vunpack.c.h.b16 %v396
    %v490 = vunpack.c.l.b16 %v397
    %v491 = vpack.c.b16 %v467, %v464
    %v492 = vpack.c.b16 %v468, %v465
    %v493 = vpack.c.b16 %v469, %v466
    %v494 = vpack.c.b16 %v473, %v470
    %v495 = vpack.c.b16 %v474, %v471
    %v496 = vpack.c.b16 %v475, %v472
    %v497 = vpack.c.b16 %v479, %v476
    %v498 = vpack.c.b16 %v480, %v477
    %v499 = vpack.c.b16 %v481, %v478
    %v500 = vpack.c.b16 %v485, %v482
    %v501 = vpack.c.b16 %v486, %v483
    %v502 = vpack.c.b16 %v487, %v484
    %v503 = vpack.c.b16 %v488, %v488
    %v504 = vpack.c.b16 %v489, %v489
    %v505 = vpack.c.b16 %v490, %v490
    %v569 = vunpack.c.l.b16 %v398
    %v570 = vunpack.c.h.b16 %v398
    %v571 = vunpack.c.l.b16 %v399
    %v572 = vunpack.c.h.b16 %v399
    %v573 = vunpack.c.l.b16 %v400
    %v574 = vunpack.c.h.b16 %v400
    %v575 = vunpack.c.l.b16 %v401
    %v576 = vunpack.c.h.b16 %v401
    %v577 = vunpack.c.l.b16 %v402
    %v578 = vunpack.c.h.b16 %v402
    %v579 = vunpack.c.l.b16 %v403
    %v580 = vunpack.c.h.b16 %v403
    %v581 = vunpack.c.l.b16 %v404
    %v582 = vunpack.c.h.b16 %v404
    %v583 = vunpack.c.l.b16 %v405
    %v584 = vunpack.c.h.b16 %v405
    %v585 = vunpack.c.l.b16 %v406
    %v586 = vunpack.c.h.b16 %v406
    %v587 = vunpack.c.l.b16 %v407
    %v588 = vunpack.c.h.b16 %v407
    %v589 = vunpack.c.l.b16 %v408
    %v590 = vunpack.c.h.b16 %v408
    %v591 = vunpack.c.l.b16 %v409
    %v592 = vunpack.c.h.b16 %v409
    %v593 = vunpack.c.l.b16 %v410
    %v594 = vunpack.c.h.b16 %v410
    %v595 = vunpack.c.l.b16 %v411
    %v596 = vunpack.c.h.b16 %v411
    %v597 = vunpack.c.l.b16 %v412
    %v598 = vunpack.c.h.b16 %v412
    %v599 = vunpack.c.l.b16 %v413
    %v600 = vunpack.c.h.b16 %v413
    %v601 = vunpack.c.l.b16 %v414
    %v602 = vunpack.c.h.b16 %v414
    %v603 = vunpack.c.l.b16 %v415
    %v604 = vunpack.c.h.b16 %v415
    %v605 = vunpack.c.l.b16 %v416
    %v606 = vunpack.c.h.b16 %v416
    %v607 = vunpack.c.l.b16 %v417
    %v608 = vunpack.c.h.b16 %v417
    %v609 = vunpack.c.l.b16 %v418
    %v610 = vunpack.c.h.b16 %v418
    %v611 = vunpack.c.l.b16 %v419
    %v612 = vunpack.c.h.b16 %v419
    %v613 = vunpack.c.l.b16 %v420
    %v614 = vunpack.c.h.b16 %v420
    %v615 = vunpack.c.l.b16 %v421
    %v616 = vunpack.c.h.b16 %v421
    %v617 = vunpack.c.l.b16 %v422
    %v618 = vunpack.c.h.b16 %v422
    %v619 = vunpack.c.l.b16 %v423
    %v620 = vunpack.c.h.b16 %v423
    %v621 = vunpack.c.l.b16 %v424
    %v622 = vunpack.c.h.b16 %v424
    %v623 = vunpack.c.l.b16 %v425
    %v624 = vunpack.c.h.b16 %v425
    %v625 = vunpack.c.l.b16 %v426
    %v626 = vunpack.c.h.b16 %v426
    %v627 = vunpack.c.l.b16 %v427
    %v628 = vunpack.c.h.b16 %v427
    %v629 = vunpack.c.l.b16 %v428
    %v630 = vunpack.c.h.b16 %v428
    %v631 = vunpack.c.l.b16 %v429
    %v632 = vunpack.c.h.b16 %v429
    %v633 = vunpack.c.l.b16 %v430
    %v634 = vunpack.c.h.b16 %v430
    %v635 = vunpack.c.l.b16 %v431
    %v636 = vunpack.c.h.b16 %v431
    %v637 = vunpack.c.l.b16 %v432
    %v638 = vunpack.c.h.b16 %v432
    %v639 = vunpack.c.l.b16 %v433
    %v640 = vunpack.c.h.b16 %v433
    %v641 = vunpack.c.l.b16 %v434
    %v642 = vunpack.c.h.b16 %v434
    %v643 = vunpack.c.l.b16 %v435
    %v644 = vunpack.c.h.b16 %v435
    %v645 = vunpack.c.l.b16 %v436
    %v646 = vunpack.c.h.b16 %v436
    %v647 = vunpack.c.l.b16 %v437
    %v648 = vunpack.c.h.b16 %v437
    %v649 = vunpack.c.l.b16 %v438
    %v650 = vunpack.c.h.b16 %v438
    %v651 = vunpack.c.l.b16 %v439
    %v652 = vunpack.c.h.b16 %v439
    %v653 = vunpack.c.l.b16 %v440
    %v654 = vunpack.c.h.b16 %v440
    %v655 = vunpack.c.l.b16 %v441
    %v656 = vunpack.c.h.b16 %v441
    %v657 = vunpack.c.l.b16 %v442
    %v658 = vunpack.c.h.b16 %v442
    %v659 = vunpack.c.l.b16 %v443
    %v660 = vunpack.c.h.b16 %v443
    %v661 = vunpack.c.l.b16 %v444
    %v662 = vunpack.c.h.b16 %v444
    %v663 = vunpack.c.l.b16 %v445
    %v664 = vunpack.c.h.b16 %v445
    %v665 = vpack.c.b16 %v571, %v569
    %v666 = vpack.c.b16 %v572, %v570
    %v667 = vpack.c.b16 %v575, %v573
    %v668 = vpack.c.b16 %v576, %v574
    %v669 = vpack.c.b16 %v579, %v577
    %v670 = vpack.c.b16 %v580, %v578
    %v671 = vpack.c.b16 %v583, %v581
    %v672 = vpack.c.b16 %v584, %v582
    %v673 = vpack.c.b16 %v587, %v585
    %v674 = vpack.c.b16 %v588, %v586
    %v675 = vpack.c.b16 %v591, %v589
    %v676 = vpack.c.b16 %v592, %v590
    %v677 = vpack.c.b16 %v595, %v593
    %v678 = vpack.c.b16 %v596, %v594
    %v679 = vpack.c.b16 %v599, %v597
    %v680 = vpack.c.b16 %v600, %v598
    %v681 = vpack.c.b16 %v603, %v601
    %v682 = vpack.c.b16 %v604, %v602
    %v683 = vpack.c.b16 %v607, %v605
    %v684 = vpack.c.b16 %v608, %v606
    %v685 = vpack.c.b16 %v611, %v609
    %v686 = vpack.c.b16 %v612, %v610
    %v687 = vpack.c.b16 %v615, %v613
    %v688 = vpack.c.b16 %v616, %v614
    %v689 = vpack.c.b16 %v619, %v617
    %v690 = vpack.c.b16 %v620, %v618
    %v691 = vpack.c.b16 %v623, %v621
    %v692 = vpack.c.b16 %v624, %v622
    %v693 = vpack.c.b16 %v627, %v625
    %v694 = vpack.c.b16 %v628, %v626
    %v695 = vpack.c.b16 %v631, %v629
    %v696 = vpack.c.b16 %v632, %v630
    %v697 = vpack.c.b16 %v635, %v633
    %v698 = vpack.c.b16 %v636, %v634
    %v699 = vpack.c.b16 %v639, %v637
    %v700 = vpack.c.b16 %v640, %v638
    %v701 = vpack.c.b16 %v643, %v641
    %v702 = vpack.c.b16 %v644, %v642
    %v703 = vpack.c.b16 %v647, %v645
    %v704 = vpack.c.b16 %v648, %v646
    %v705 = vpack.c.b16 %v651, %v649
    %v706 = vpack.c.b16 %v652, %v650
    %v707 = vpack.c.b16 %v655, %v653
    %v708 = vpack.c.b16 %v656, %v654
    %v709 = vpack.c.b16 %v659, %v657
    %v710 = vpack.c.b16 %v660, %v658
    %v711 = vpack.c.b16 %v663, %v661
    %v712 = vpack.c.b16 %v664, %v662
    %761 = vmatprep.subr.bf16.mxu0 %v666
    %762 = vmatpush1.bf16.msra.mxu0 %v665
    %763 = vmatprep.subr.bf16.mxu0 %v668
    %764 = vmatpush1.bf16.msra.mxu0 %v667
    %765 = vmatprep.subr.bf16.mxu0 %v670
    %766 = vmatpush1.bf16.msra.mxu0 %v669
    %767 = vmatprep.subr.bf16.mxu0 %v672
    %768 = vmatpush1.bf16.msra.mxu0 %v671
    %769 = vmatprep.subr.bf16.mxu0 %v674
    %770 = vmatpush1.bf16.msra.mxu0 %v673
    %771 = vmatprep.subr.bf16.mxu0 %v676
    %772 = vmatpush1.bf16.msra.mxu0 %v675
    %773 = vmatprep.subr.bf16.mxu0 %v678
    %774 = vmatpush1.bf16.msra.mxu0 %v677
    %775 = vmatprep.subr.bf16.mxu0 %v680
    %776 = vmatpush1.bf16.msra.mxu0 %v679
    %777 = vmatprep.subr.bf16.mxu0 %v682
    %778 = vmatpush1.bf16.msra.mxu0 %v681
    %779 = vmatprep.subr.bf16.mxu0 %v684
    %780 = vmatpush1.bf16.msra.mxu0 %v683
    %781 = vmatprep.subr.bf16.mxu0 %v686
    %782 = vmatpush1.bf16.msra.mxu0 %v685
    %783 = vmatprep.subr.bf16.mxu0 %v688
    %784 = vmatpush1.bf16.msra.mxu0 %v687
    %785 = vmatprep.subr.bf16.mxu0 %v690
    %786 = vmatpush1.bf16.msra.mxu0 %v689
    %787 = vmatprep.subr.bf16.mxu0 %v692
    %788 = vmatpush1.bf16.msra.mxu0 %v691
    %789 = vmatprep.subr.bf16.mxu0 %v694
    %790 = vmatpush1.bf16.msra.mxu0 %v693
    %791 = vmatprep.subr.bf16.mxu0 %v696
    %792 = vmatpush1.bf16.msra.mxu0 %v695
    %793 = vmatprep.mubr.bf16.mxu0 %v492
    %794 = vmatmul.mubr.bf16.gmra.mrb[0].mxu0 %v491
    %v795 = vpop.f32.mrb[0].mxu0
    %v796 = vadd.f32 0.0, %v795
    %v797 = vpop.f32.mrb[0].mxu0
    %v798 = vadd.f32 0.0, %v797
    %v799 = vpop.f32.mrb[0].mxu0
    %v800 = vadd.f32 0.0, %v799
    %v801 = vpop.f32.mrb[0].mxu0
    %v802 = vadd.f32 0.0, %v801
    %803 = vmatprep.mubr.bf16.mxu0 %v495
    %804 = vmatmul.mubr.bf16.gmra.mrb[0].mxu0 %v494
    %v805 = vpop.f32.mrb[0].mxu0
    %v806 = vadd.f32 0.0, %v805
    %v807 = vpop.f32.mrb[0].mxu0
    %v808 = vadd.f32 0.0, %v807
    %v809 = vpop.f32.mrb[0].mxu0
    %v810 = vadd.f32 0.0, %v809
    %v811 = vpop.f32.mrb[0].mxu0
    %v812 = vadd.f32 0.0, %v811
    %813 = vmatprep.mubr.bf16.mxu0 %v498
    %814 = vmatmul.mubr.bf16.gmra.mrb[0].mxu0 %v497
    %v815 = vpop.f32.mrb[0].mxu0
    %v816 = vadd.f32 0.0, %v815
    %v817 = vpop.f32.mrb[0].mxu0
    %v818 = vadd.f32 0.0, %v817
    %v819 = vpop.f32.mrb[0].mxu0
    %v820 = vadd.f32 0.0, %v819
    %v821 = vpop.f32.mrb[0].mxu0
    %v822 = vadd.f32 0.0, %v821
    %823 = vmatprep.mubr.bf16.mxu0 %v501
    %824 = vmatmul.mubr.bf16.gmra.mrb[0].mxu0 %v500
    %v825 = vpop.f32.mrb[0].mxu0
    %v826 = vadd.f32 0.0, %v825
    %v827 = vpop.f32.mrb[0].mxu0
    %v828 = vadd.f32 0.0, %v827
    %v829 = vpop.f32.mrb[0].mxu0
    %v830 = vadd.f32 0.0, %v829
    %v831 = vpop.f32.mrb[0].mxu0
    %v832 = vadd.f32 0.0, %v831
    %833 = vmatprep.mubr.bf16.mxu0 %v504
    %834 = vmatmul.mubr.bf16.gmra.mrb[0].mxu0 %v503
    %v835 = vpop.f32.mrb[0].mxu0
    %v836 = vadd.f32 0.0, %v835
    %v837 = vpop.f32.mrb[0].mxu0
    %v838 = vadd.f32 0.0, %v837
    %v839 = vpop.f32.mrb[0].mxu0
    %v840 = vpop.f32.mrb[0].mxu0
    %841 = vdwg.mxu0
    %842 = vmatprep.subr.bf16.mxu0 %v698
    %843 = vmatpush1.bf16.msra.mxu0 %v697
    %844 = vmatprep.subr.bf16.mxu0 %v700
    %845 = vmatpush1.bf16.msra.mxu0 %v699
    %846 = vmatprep.subr.bf16.mxu0 %v702
    %847 = vmatpush1.bf16.msra.mxu0 %v701
    %848 = vmatprep.subr.bf16.mxu0 %v704
    %849 = vmatpush1.bf16.msra.mxu0 %v703
    %850 = vmatprep.subr.bf16.mxu0 %v706
    %851 = vmatpush1.bf16.msra.mxu0 %v705
    %852 = vmatprep.subr.bf16.mxu0 %v708
    %853 = vmatpush1.bf16.msra.mxu0 %v707
    %854 = vmatprep.subr.bf16.mxu0 %v710
    %855 = vmatpush1.bf16.msra.mxu0 %v709
    %856 = vmatprep.subr.bf16.mxu0 %v712
    %857 = vmatpush1.bf16.msra.mxu0 %v711
    %858 = vmatprep.subr.bf16.mxu0 0
    %859 = vmatpush1.bf16.msra.mxu0 0
    %860 = vmatprep.subr.bf16.mxu0 0
    %861 = vmatpush1.bf16.msra.mxu0 0
    %862 = vmatprep.subr.bf16.mxu0 0
    %863 = vmatpush1.bf16.msra.mxu0 0
    %864 = vmatprep.subr.bf16.mxu0 0
    %865 = vmatpush1.bf16.msra.mxu0 0
    %866 = vmatprep.subr.bf16.mxu0 0
    %867 = vmatpush1.bf16.msra.mxu0 0
    %868 = vmatprep.subr.bf16.mxu0 0
    %869 = vmatpush1.bf16.msra.mxu0 0
    %870 = vmatprep.subr.bf16.mxu0 0
    %871 = vmatpush1.bf16.msra.mxu0 0
    %872 = vmatprep.subr.bf16.mxu0 0
    %873 = vmatpush1.bf16.msra.mxu0 0
    %874 = vmatprep.mubr.bf16.mxu0 0
    %875 = vmatmul.mubr.bf16.gmra.mrb[0].mxu0 %v493
    %v876 = vpop.f32.mrb[0].mxu0
    %v877 = vadd.f32 %v796, %v876
    %v878 = vpop.f32.mrb[0].mxu0
    %v879 = vadd.f32 %v798, %v878
    %v880 = vpop.f32.mrb[0].mxu0
    %v881 = vadd.f32 %v800, %v880
    %v882 = vpop.f32.mrb[0].mxu0
    %v883 = vadd.f32 %v802, %v882
    %884 = vmatprep.mubr.bf16.mxu0 0
    %885 = vmatmul.mubr.bf16.gmra.mrb[0].mxu0 %v496
    %v886 = vpop.f32.mrb[0].mxu0
    %v887 = vadd.f32 %v806, %v886
    %v888 = vpop.f32.mrb[0].mxu0
    %v889 = vadd.f32 %v808, %v888
    %v890 = vpop.f32.mrb[0].mxu0
    %v891 = vadd.f32 %v810, %v890
    %v892 = vpop.f32.mrb[0].mxu0
    %v893 = vadd.f32 %v812, %v892
    %894 = vmatprep.mubr.bf16.mxu0 0
    %895 = vmatmul.mubr.bf16.gmra.mrb[0].mxu0 %v499
    %v896 = vpop.f32.mrb[0].mxu0
    %v897 = vadd.f32 %v816, %v896
    %v898 = vpop.f32.mrb[0].mxu0
    %v899 = vadd.f32 %v818, %v898
    %v900 = vpop.f32.mrb[0].mxu0
    %v901 = vadd.f32 %v820, %v900
    %v902 = vpop.f32.mrb[0].mxu0
    %v903 = vadd.f32 %v822, %v902
    %904 = vmatprep.mubr.bf16.mxu0 0
    %905 = vmatmul.mubr.bf16.gmra.mrb[0].mxu0 %v502
    %v906 = vpop.f32.mrb[0].mxu0
    %v907 = vadd.f32 %v826, %v906
    %v908 = vpop.f32.mrb[0].mxu0
    %v909 = vadd.f32 %v828, %v908
    %v910 = vpop.f32.mrb[0].mxu0
    %v911 = vadd.f32 %v830, %v910
    %v912 = vpop.f32.mrb[0].mxu0
    %v913 = vadd.f32 %v832, %v912
    %914 = vmatprep.mubr.bf16.mxu0 0
    %915 = vmatmul.mubr.bf16.gmra.mrb[0].mxu0 %v505
    %v916 = vpop.f32.mrb[0].mxu0
    %v917 = vadd.f32 %v836, %v916
    %v918 = vpop.f32.mrb[0].mxu0
    %v919 = vadd.f32 %v838, %v918
    %v920 = vpop.f32.mrb[0].mxu0
    %v921 = vpop.f32.mrb[0].mxu0
    %922 = vdwg.mxu0
    %v923 = vld [vmem:[%s1 + $0x1] sm:$0xff]
    %v924 = vld [vmem:[%s1 + $0x9] sm:$0xff]
    %v925 = vld [vmem:[%s1 + $0x11] sm:$0xff]
    %v926 = vld [vmem:[%s1 + $0x19] sm:$0xff]
    %v927 = vld [vmem:[%s1 + $0x21] sm:$0xff]
    %v928 = vld [vmem:[%s1 + $0x29] sm:$0xff]
    %v929 = vld [vmem:[%s1 + $0x31] sm:$0xff]
    %v930 = vld [vmem:[%s1 + $0x39] sm:$0xff]
    %v931 = vld [vmem:[%s1 + $0x41] sm:$0xf]
    %933 = vset.pattern.permute.xlu0 0
    %934 = vperm.xlu0 %933, %v923
    %v935 = vpop.permute.xlu0 %934
    %938 = vset.pattern.permute.xlu0 0
    %939 = vperm.xlu0 %938, %v924
    %v940 = vpop.permute.xlu0 %939
    %943 = vset.pattern.permute.xlu0 0
    %944 = vperm.xlu0 %943, %v925
    %v945 = vpop.permute.xlu0 %944
    %948 = vset.pattern.permute.xlu0 0
    %949 = vperm.xlu0 %948, %v926
    %v950 = vpop.permute.xlu0 %949
    %953 = vset.pattern.permute.xlu0 0
    %954 = vperm.xlu0 %953, %v927
    %v955 = vpop.permute.xlu0 %954
    %958 = vset.pattern.permute.xlu0 0
    %959 = vperm.xlu0 %958, %v928
    %v960 = vpop.permute.xlu0 %959
    %963 = vset.pattern.permute.xlu0 0
    %964 = vperm.xlu0 %963, %v929
    %v965 = vpop.permute.xlu0 %964
    %968 = vset.pattern.permute.xlu0 0
    %969 = vperm.xlu0 %968, %v930
    %v970 = vpop.permute.xlu0 %969
    %973 = vset.pattern.permute.xlu0 0
    %974 = vperm.xlu0 %973, %v931
    %v975 = vpop.permute.xlu0 %974
    %v977 = vmul.f32 %v877, %v935
    %v978 = vmul.f32 %v879, %v935
    %v979 = vmul.f32 %v881, %v940
    %v980 = vmul.f32 %v883, %v940
    %v981 = vmul.f32 %v887, %v945
    %v982 = vmul.f32 %v889, %v945
    %v983 = vmul.f32 %v891, %v950
    %v984 = vmul.f32 %v893, %v950
    %v985 = vmul.f32 %v897, %v955
    %v986 = vmul.f32 %v899, %v955
    %v987 = vmul.f32 %v901, %v960
    %v988 = vmul.f32 %v903, %v960
    %v989 = vmul.f32 %v907, %v965
    %v990 = vmul.f32 %v909, %v965
    %v991 = vmul.f32 %v911, %v970
    %v992 = vmul.f32 %v913, %v970
    %v993 = vmul.f32 %v917, %v975
    %v994 = vmul.f32 %v919, %v975
    %v995 = vld [vmem:[%s10] sm:$0xff]
    %v996 = vld [vmem:[%s10 + $0x8] sm:$0xff]
    %v997 = vld [vmem:[%s10 + $0x10] sm:$0xff]
    %v998 = vld [vmem:[%s10 + $0x18] sm:$0xff]
    %v999 = vld [vmem:[%s10 + $0x20] sm:$0xff]
    %v1000 = vld [vmem:[%s10 + $0x28] sm:$0xff]
    %v1001 = vld [vmem:[%s10 + $0x30] sm:$0xff]
    %v1002 = vld [vmem:[%s10 + $0x38] sm:$0xff]
    %v1003 = vld [vmem:[%s10 + $0x40] sm:$0xff]
    %v1004 = vld [vmem:[%s10 + $0x48] sm:$0xff]
    %v1005 = vld [vmem:[%s10 + $0x50] sm:$0xff]
    %v1006 = vld [vmem:[%s10 + $0x58] sm:$0xff]
    %v1007 = vld [vmem:[%s10 + $0x60] sm:$0xff]
    %v1008 = vld [vmem:[%s10 + $0x68] sm:$0xff]
    %v1009 = vld [vmem:[%s10 + $0x70] sm:$0xff]
    %v1010 = vld [vmem:[%s10 + $0x78] sm:$0xff]
    %v1011 = vld [vmem:[%s10 + $0x80] sm:$0xff]
    %v1012 = vld [vmem:[%s10 + $0x88] sm:$0xff]
    %v1013 = vld [vmem:[%s10 + $0x90] sm:$0xff]
    %v1014 = vld [vmem:[%s10 + $0x98] sm:$0xff]
    %v1015 = vld [vmem:[%s10 + $0xa0] sm:$0xff]
    %v1016 = vld [vmem:[%s10 + $0xa8] sm:$0xff]
    %v1017 = vld [vmem:[%s10 + $0xb0] sm:$0xff]
    %v1018 = vld [vmem:[%s10 + $0xb8] sm:$0xff]
    %v1019 = vld [vmem:[%s10 + $0xc0] sm:$0xff]
    %v1020 = vld [vmem:[%s10 + $0xc8] sm:$0xff]
    %v1021 = vld [vmem:[%s10 + $0xd0] sm:$0xff]
    %v1022 = vld [vmem:[%s10 + $0xd8] sm:$0xff]
    %v1023 = vld [vmem:[%s10 + $0xe0] sm:$0xff]
    %v1024 = vld [vmem:[%s10 + $0xe8] sm:$0xff]
    %v1025 = vld [vmem:[%s10 + $0xf0] sm:$0xff]
    %v1026 = vld [vmem:[%s10 + $0xf8] sm:$0xff]
    %1027 = vmatprep.subr.mxu0 0.0
    %1028 = vmatpush1.msra.mxu0 %v995
    %1029 = vmatprep.subr.mxu0 0.0
    %1030 = vmatpush1.msra.mxu0 %v996
    %1031 = vmatprep.subr.mxu0 0.0
    %1032 = vmatpush1.msra.mxu0 %v997
    %1033 = vmatprep.subr.mxu0 0.0
    %1034 = vmatpush1.msra.mxu0 %v998
    %1035 = vmatprep.subr.mxu0 0.0
    %1036 = vmatpush1.msra.mxu0 %v999
    %1037 = vmatprep.subr.mxu0 0.0
    %1038 = vmatpush1.msra.mxu0 %v1000
    %1039 = vmatprep.subr.mxu0 0.0
    %1040 = vmatpush1.msra.mxu0 %v1001
    %1041 = vmatprep.subr.mxu0 0.0
    %1042 = vmatpush1.msra.mxu0 %v1002
    %1043 = vmatprep.subr.mxu0 0.0
    %1044 = vmatpush1.msra.mxu0 %v1003
    %1045 = vmatprep.subr.mxu0 0.0
    %1046 = vmatpush1.msra.mxu0 %v1004
    %1047 = vmatprep.subr.mxu0 0.0
    %1048 = vmatpush1.msra.mxu0 %v1005
    %1049 = vmatprep.subr.mxu0 0.0
    %1050 = vmatpush1.msra.mxu0 %v1006
    %1051 = vmatprep.subr.mxu0 0.0
    %1052 = vmatpush1.msra.mxu0 %v1007
    %1053 = vmatprep.subr.mxu0 0.0
    %1054 = vmatpush1.msra.mxu0 %v1008
    %1055 = vmatprep.subr.mxu0 0.0
    %1056 = vmatpush1.msra.mxu0 %v1009
    %1057 = vmatprep.subr.mxu0 0.0
    %1058 = vmatpush1.msra.mxu0 %v1010
    %1059 = vmatprep.subr.mxu0 0.0
    %1060 = vmatpush1.msra.mxu0 %v1011
    %1061 = vmatprep.subr.mxu0 0.0
    %1062 = vmatpush1.msra.mxu0 %v1012
    %1063 = vmatprep.subr.mxu0 0.0
    %1064 = vmatpush1.msra.mxu0 %v1013
    %1065 = vmatprep.subr.mxu0 0.0
    %1066 = vmatpush1.msra.mxu0 %v1014
    %1067 = vmatprep.subr.mxu0 0.0
    %1068 = vmatpush1.msra.mxu0 %v1015
    %1069 = vmatprep.subr.mxu0 0.0
    %1070 = vmatpush1.msra.mxu0 %v1016
    %1071 = vmatprep.subr.mxu0 0.0
    %1072 = vmatpush1.msra.mxu0 %v1017
    %1073 = vmatprep.subr.mxu0 0.0
    %1074 = vmatpush1.msra.mxu0 %v1018
    %1075 = vmatprep.subr.mxu0 0.0
    %1076 = vmatpush1.msra.mxu0 %v1019
    %1077 = vmatprep.subr.mxu0 0.0
    %1078 = vmatpush1.msra.mxu0 %v1020
    %1079 = vmatprep.subr.mxu0 0.0
    %1080 = vmatpush1.msra.mxu0 %v1021
    %1081 = vmatprep.subr.mxu0 0.0
    %1082 = vmatpush1.msra.mxu0 %v1022
    %1083 = vmatprep.subr.mxu0 0.0
    %1084 = vmatpush1.msra.mxu0 %v1023
    %1085 = vmatprep.subr.mxu0 0.0
    %1086 = vmatpush1.msra.mxu0 %v1024
    %1087 = vmatprep.subr.mxu0 0.0
    %1088 = vmatpush1.msra.mxu0 %v1025
    %1089 = vmatprep.subr.mxu0 0.0
    %1090 = vmatpush1.msra.mxu0 %v1026
    %1091 = vmatprep.mubr.f32.mxu0 %v978
    %1092 = vmatmul.mubr.f32.gmra.mrb[0].mxu0 %v977
    %v1093 = vpop.f32.mrb[0].mxu0
    %v1094 = vadd.f32 0.0, %v1093
    %v1095 = vpop.f32.mrb[0].mxu0
    %1096 = vmatprep.mubr.f32.mxu0 %v980
    %1097 = vmatmul.mubr.f32.gmra.mrb[0].mxu0 %v979
    %v1098 = vpop.f32.mrb[0].mxu0
    %v1099 = vadd.f32 0.0, %v1098
    %v1100 = vpop.f32.mrb[0].mxu0
    %1101 = vmatprep.mubr.f32.mxu0 %v982
    %1102 = vmatmul.mubr.f32.gmra.mrb[0].mxu0 %v981
    %v1103 = vpop.f32.mrb[0].mxu0
    %v1104 = vadd.f32 0.0, %v1103
    %v1105 = vpop.f32.mrb[0].mxu0
    %1106 = vmatprep.mubr.f32.mxu0 %v984
    %1107 = vmatmul.mubr.f32.gmra.mrb[0].mxu0 %v983
    %v1108 = vpop.f32.mrb[0].mxu0
    %v1109 = vadd.f32 0.0, %v1108
    %v1110 = vpop.f32.mrb[0].mxu0
    %1111 = vmatprep.mubr.f32.mxu0 %v986
    %1112 = vmatmul.mubr.f32.gmra.mrb[0].mxu0 %v985
    %v1113 = vpop.f32.mrb[0].mxu0
    %v1114 = vadd.f32 0.0, %v1113
    %v1115 = vpop.f32.mrb[0].mxu0
    %1116 = vmatprep.mubr.f32.mxu0 %v988
    %1117 = vmatmul.mubr.f32.gmra.mrb[0].mxu0 %v987
    %v1118 = vpop.f32.mrb[0].mxu0
    %v1119 = vadd.f32 0.0, %v1118
    %v1120 = vpop.f32.mrb[0].mxu0
    %1121 = vmatprep.mubr.f32.mxu0 %v990
    %1122 = vmatmul.mubr.f32.gmra.mrb[0].mxu0 %v989
    %v1123 = vpop.f32.mrb[0].mxu0
    %v1124 = vadd.f32 0.0, %v1123
    %v1125 = vpop.f32.mrb[0].mxu0
    %1126 = vmatprep.mubr.f32.mxu0 %v992
    %1127 = vmatmul.mubr.f32.gmra.mrb[0].mxu0 %v991
    %v1128 = vpop.f32.mrb[0].mxu0
    %v1129 = vadd.f32 0.0, %v1128
    %v1130 = vpop.f32.mrb[0].mxu0
    %1131 = vmatprep.mubr.f32.mxu0 %v994
    %1132 = vmatmul.mubr.f32.gmra.mrb[0].mxu0 %v993
    %v1133 = vpop.f32.mrb[0].mxu0
    %v1134 = vadd.f32 0.0, %v1133
    %v1135 = vpop.f32.mrb[0].mxu0
    %1136 = vdwg.mxu0
    %vm1137 = vcmask 64512
    %v1138 = vsel %vm1137, %v1094, 0.0
    %v1139 = vsel %vm1137, %v1099, 0.0
    %v1140 = vadd.f32 %v1138, %v1139
    %v1141 = vsel %vm1137, %v1104, 0.0
    %v1142 = vadd.f32 %v1140, %v1141
    %v1143 = vsel %vm1137, %v1109, 0.0
    %v1144 = vadd.f32 %v1142, %v1143
    %v1145 = vsel %vm1137, %v1114, 0.0
    %v1146 = vadd.f32 %v1144, %v1145
    %v1147 = vsel %vm1137, %v1119, 0.0
    %v1148 = vadd.f32 %v1146, %v1147
    %v1149 = vsel %vm1137, %v1124, 0.0
    %v1150 = vadd.f32 %v1148, %v1149
    %v1151 = vsel %vm1137, %v1129, 0.0
    %v1152 = vadd.f32 %v1150, %v1151
    %vm1153 = vcmask 60416
    %v1154 = vsel %vm1153, %v1134, 0.0
    %v1155 = vadd.f32 %v1152, %v1154
    %v1156 = vrot.slane %v1155, 4
    %v1157 = vadd.f32 %v1155, %v1156
    %v1158 = vrot.slane %v1157, 2
    %v1159 = vadd.f32 %v1157, %v1158
    %v1160 = vrot.slane %v1159, 1
    %v1161 = vadd.f32 %v1159, %v1160
    %v1162 = vmul.f32 %v977, %v977
    %v1163 = vmul.f32 %v978, %v978
    %v1164 = vmul.f32 %v979, %v979
    %v1165 = vmul.f32 %v980, %v980
    %v1166 = vmul.f32 %v981, %v981
    %v1167 = vmul.f32 %v982, %v982
    %v1168 = vmul.f32 %v983, %v983
    %v1169 = vmul.f32 %v984, %v984
    %v1170 = vmul.f32 %v985, %v985
    %v1171 = vmul.f32 %v986, %v986
    %v1172 = vmul.f32 %v987, %v987
    %v1173 = vmul.f32 %v988, %v988
    %v1174 = vmul.f32 %v989, %v989
    %v1175 = vmul.f32 %v990, %v990
    %v1176 = vmul.f32 %v991, %v991
    %v1177 = vmul.f32 %v992, %v992
    %v1178 = vmul.f32 %v993, %v993
    %v1179 = vmul.f32 %v994, %v994
    %1180 = vmatprep.subr.mxu0 0.0
    %1181 = vmatpush1.msra.mxu0 %v995
    %1182 = vmatprep.subr.mxu0 0.0
    %1183 = vmatpush1.msra.mxu0 %v996
    %1184 = vmatprep.subr.mxu0 0.0
    %1185 = vmatpush1.msra.mxu0 %v997
    %1186 = vmatprep.subr.mxu0 0.0
    %1187 = vmatpush1.msra.mxu0 %v998
    %1188 = vmatprep.subr.mxu0 0.0
    %1189 = vmatpush1.msra.mxu0 %v999
    %1190 = vmatprep.subr.mxu0 0.0
    %1191 = vmatpush1.msra.mxu0 %v1000
    %1192 = vmatprep.subr.mxu0 0.0
    %1193 = vmatpush1.msra.mxu0 %v1001
    %1194 = vmatprep.subr.mxu0 0.0
    %1195 = vmatpush1.msra.mxu0 %v1002
    %1196 = vmatprep.subr.mxu0 0.0
    %1197 = vmatpush1.msra.mxu0 %v1003
    %1198 = vmatprep.subr.mxu0 0.0
    %1199 = vmatpush1.msra.mxu0 %v1004
    %1200 = vmatprep.subr.mxu0 0.0
    %1201 = vmatpush1.msra.mxu0 %v1005
    %1202 = vmatprep.subr.mxu0 0.0
    %1203 = vmatpush1.msra.mxu0 %v1006
    %1204 = vmatprep.subr.mxu0 0.0
    %1205 = vmatpush1.msra.mxu0 %v1007
    %1206 = vmatprep.subr.mxu0 0.0
    %1207 = vmatpush1.msra.mxu0 %v1008
    %1208 = vmatprep.subr.mxu0 0.0
    %1209 = vmatpush1.msra.mxu0 %v1009
    %1210 = vmatprep.subr.mxu0 0.0
    %1211 = vmatpush1.msra.mxu0 %v1010
    %1212 = vmatprep.subr.mxu0 0.0
    %1213 = vmatpush1.msra.mxu0 %v1011
    %1214 = vmatprep.subr.mxu0 0.0
    %1215 = vmatpush1.msra.mxu0 %v1012
    %1216 = vmatprep.subr.mxu0 0.0
    %1217 = vmatpush1.msra.mxu0 %v1013
    %1218 = vmatprep.subr.mxu0 0.0
    %1219 = vmatpush1.msra.mxu0 %v1014
    %1220 = vmatprep.subr.mxu0 0.0
    %1221 = vmatpush1.msra.mxu0 %v1015
    %1222 = vmatprep.subr.mxu0 0.0
    %1223 = vmatpush1.msra.mxu0 %v1016
    %1224 = vmatprep.subr.mxu0 0.0
    %1225 = vmatpush1.msra.mxu0 %v1017
    %1226 = vmatprep.subr.mxu0 0.0
    %1227 = vmatpush1.msra.mxu0 %v1018
    %1228 = vmatprep.subr.mxu0 0.0
    %1229 = vmatpush1.msra.mxu0 %v1019
    %1230 = vmatprep.subr.mxu0 0.0
    %1231 = vmatpush1.msra.mxu0 %v1020
    %1232 = vmatprep.subr.mxu0 0.0
    %1233 = vmatpush1.msra.mxu0 %v1021
    %1234 = vmatprep.subr.mxu0 0.0
    %1235 = vmatpush1.msra.mxu0 %v1022
    %1236 = vmatprep.subr.mxu0 0.0
    %1237 = vmatpush1.msra.mxu0 %v1023
    %1238 = vmatprep.subr.mxu0 0.0
    %1239 = vmatpush1.msra.mxu0 %v1024
    %1240 = vmatprep.subr.mxu0 0.0
    %1241 = vmatpush1.msra.mxu0 %v1025
    %1242 = vmatprep.subr.mxu0 0.0
    %1243 = vmatpush1.msra.mxu0 %v1026
    %1244 = vmatprep.mubr.f32.mxu0 %v1163
    %1245 = vmatmul.mubr.f32.gmra.mrb[0].mxu0 %v1162
    %v1246 = vpop.f32.mrb[0].mxu0
    %v1247 = vadd.f32 0.0, %v1246
    %v1248 = vpop.f32.mrb[0].mxu0
    %1249 = vmatprep.mubr.f32.mxu0 %v1165
    %1250 = vmatmul.mubr.f32.gmra.mrb[0].mxu0 %v1164
    %v1251 = vpop.f32.mrb[0].mxu0
    %v1252 = vadd.f32 0.0, %v1251
    %v1253 = vpop.f32.mrb[0].mxu0
    %1254 = vmatprep.mubr.f32.mxu0 %v1167
    %1255 = vmatmul.mubr.f32.gmra.mrb[0].mxu0 %v1166
    %v1256 = vpop.f32.mrb[0].mxu0
    %v1257 = vadd.f32 0.0, %v1256
    %v1258 = vpop.f32.mrb[0].mxu0
    %1259 = vmatprep.mubr.f32.mxu0 %v1169
    %1260 = vmatmul.mubr.f32.gmra.mrb[0].mxu0 %v1168
    %v1261 = vpop.f32.mrb[0].mxu0
    %v1262 = vadd.f32 0.0, %v1261
    %v1263 = vpop.f32.mrb[0].mxu0
    %1264 = vmatprep.mubr.f32.mxu0 %v1171
    %1265 = vmatmul.mubr.f32.gmra.mrb[0].mxu0 %v1170
    %v1266 = vpop.f32.mrb[0].mxu0
    %v1267 = vadd.f32 0.0, %v1266
    %v1268 = vpop.f32.mrb[0].mxu0
    %1269 = vmatprep.mubr.f32.mxu0 %v1173
    %1270 = vmatmul.mubr.f32.gmra.mrb[0].mxu0 %v1172
    %v1271 = vpop.f32.mrb[0].mxu0
    %v1272 = vadd.f32 0.0, %v1271
    %v1273 = vpop.f32.mrb[0].mxu0
    %1274 = vmatprep.mubr.f32.mxu0 %v1175
    %1275 = vmatmul.mubr.f32.gmra.mrb[0].mxu0 %v1174
    %v1276 = vpop.f32.mrb[0].mxu0
    %v1277 = vadd.f32 0.0, %v1276
    %v1278 = vpop.f32.mrb[0].mxu0
    %1279 = vmatprep.mubr.f32.mxu0 %v1177
    %1280 = vmatmul.mubr.f32.gmra.mrb[0].mxu0 %v1176
    %v1281 = vpop.f32.mrb[0].mxu0
    %v1282 = vadd.f32 0.0, %v1281
    %v1283 = vpop.f32.mrb[0].mxu0
    %1284 = vmatprep.mubr.f32.mxu0 %v1179
    %1285 = vmatmul.mubr.f32.gmra.mrb[0].mxu0 %v1178
    %v1286 = vpop.f32.mrb[0].mxu0
    %v1287 = vadd.f32 0.0, %v1286
    %v1288 = vpop.f32.mrb[0].mxu0
    %1289 = vdwg.mxu0
    %v1290 = vsel %vm1137, %v1247, 0.0
    %v1291 = vsel %vm1137, %v1252, 0.0
    %v1292 = vadd.f32 %v1290, %v1291
    %v1293 = vsel %vm1137, %v1257, 0.0
    %v1294 = vadd.f32 %v1292, %v1293
    %v1295 = vsel %vm1137, %v1262, 0.0
    %v1296 = vadd.f32 %v1294, %v1295
    %v1297 = vsel %vm1137, %v1267, 0.0
    %v1298 = vadd.f32 %v1296, %v1297
    %v1299 = vsel %vm1137, %v1272, 0.0
    %v1300 = vadd.f32 %v1298, %v1299
    %v1301 = vsel %vm1137, %v1277, 0.0
    %v1302 = vadd.f32 %v1300, %v1301
    %v1303 = vsel %vm1137, %v1282, 0.0
    %v1304 = vadd.f32 %v1302, %v1303
    %v1305 = vsel %vm1153, %v1287, 0.0
    %v1306 = vadd.f32 %v1304, %v1305
    %v1307 = vrot.slane %v1306, 4
    %v1308 = vadd.f32 %v1306, %v1307
    %v1309 = vrot.slane %v1308, 2
    %v1310 = vadd.f32 %v1308, %v1309
    %v1311 = vrot.slane %v1310, 1
    %v1312 = vadd.f32 %v1310, %v1311
    %v1313 = vmul.f32 %v1161, 0.00048828125
    %v1314 = vmul.f32 %v1312, 0.00048828125
    %v1315 = vmul.f32 %v1313, %v1313
    %v1316 = vsub.f32 %v1314, %v1315
    %v1317 = vmax.f32 %v1316, 0.0
    %v1318 = vld [vmem:[%s4] sm:$0x1]
    %v1319 = vadd.f32 %v1317, 1e-05
    %v1320 = vrsqrt.pop %v1319
    %v1321 = vmul.f32 %v1318, %v1320
    %v1322 = vld [vmem:[%s5] sm:$0x1]
    %v1323 = vmul.f32 %v1313, %v1321
    %v1324 = vsub.f32 %v1322, %v1323
    %v1326 = vlaneseq
    %v1327 = vshrl.u32 %v1326, 7
    %v1328 = vsub.s32 0, %v1327
    %v1329 = vrot.slane %v1324, %v1328
    %vm1331 = vcmask 1040384
    %v1332 = vsel %vm1331, %v1321, %v1329
    %v1333 = vld [vmem:[%s11] sm:$0xff]
    %v1334 = vld [vmem:[%s11 + $0x8] sm:$0xff]
    %v1336 = vsel %vm1137, %v1332, 0
    %1338 = vmatprep.subr.mxu0 %v1334
    %1339 = vmatpush1.msra.mxu0 %v1333
    %1340 = vmatprep.subr.mxu0 0.0
    %1341 = vmatpush1.msra.mxu0 0.0
    %1342 = vmatprep.subr.mxu0 0.0
    %1343 = vmatpush1.msra.mxu0 0.0
    %1344 = vmatprep.subr.mxu0 0.0
    %1345 = vmatpush1.msra.mxu0 0.0
    %1346 = vmatprep.subr.mxu0 0.0
    %1347 = vmatpush1.msra.mxu0 0.0
    %1348 = vmatprep.subr.mxu0 0.0
    %1349 = vmatpush1.msra.mxu0 0.0
    %1350 = vmatprep.subr.mxu0 0.0
    %1351 = vmatpush1.msra.mxu0 0.0
    %1352 = vmatprep.subr.mxu0 0.0
    %1353 = vmatpush1.msra.mxu0 0.0
    %1354 = vmatprep.subr.mxu0 0.0
    %1355 = vmatpush1.msra.mxu0 0.0
    %1356 = vmatprep.subr.mxu0 0.0
    %1357 = vmatpush1.msra.mxu0 0.0
    %1358 = vmatprep.subr.mxu0 0.0
    %1359 = vmatpush1.msra.mxu0 0.0
    %1360 = vmatprep.subr.mxu0 0.0
    %1361 = vmatpush1.msra.mxu0 0.0
    %1362 = vmatprep.subr.mxu0 0.0
    %1363 = vmatpush1.msra.mxu0 0.0
    %1364 = vmatprep.subr.mxu0 0.0
    %1365 = vmatpush1.msra.mxu0 0.0
    %1366 = vmatprep.subr.mxu0 0.0
    %1367 = vmatpush1.msra.mxu0 0.0
    %1368 = vmatprep.subr.mxu0 0.0
    %1369 = vmatpush1.msra.mxu0 0.0
    %1370 = vmatprep.subr.mxu0 0.0
    %1371 = vmatpush1.msra.mxu0 0.0
    %1372 = vmatprep.subr.mxu0 0.0
    %1373 = vmatpush1.msra.mxu0 0.0
    %1374 = vmatprep.subr.mxu0 0.0
    %1375 = vmatpush1.msra.mxu0 0.0
    %1376 = vmatprep.subr.mxu0 0.0
    %1377 = vmatpush1.msra.mxu0 0.0
    %1378 = vmatprep.subr.mxu0 0.0
    %1379 = vmatpush1.msra.mxu0 0.0
    %1380 = vmatprep.subr.mxu0 0.0
    %1381 = vmatpush1.msra.mxu0 0.0
    %1382 = vmatprep.subr.mxu0 0.0
    %1383 = vmatpush1.msra.mxu0 0.0
    %1384 = vmatprep.subr.mxu0 0.0
    %1385 = vmatpush1.msra.mxu0 0.0
    %1386 = vmatprep.subr.mxu0 0.0
    %1387 = vmatpush1.msra.mxu0 0.0
    %1388 = vmatprep.subr.mxu0 0.0
    %1389 = vmatpush1.msra.mxu0 0.0
    %1390 = vmatprep.subr.mxu0 0.0
    %1391 = vmatpush1.msra.mxu0 0.0
    %1392 = vmatprep.subr.mxu0 0.0
    %1393 = vmatpush1.msra.mxu0 0.0
    %1394 = vmatprep.subr.mxu0 0.0
    %1395 = vmatpush1.msra.mxu0 0.0
    %1396 = vmatprep.subr.mxu0 0.0
    %1397 = vmatpush1.msra.mxu0 0.0
    %1398 = vmatprep.subr.mxu0 0.0
    %1399 = vmatpush1.msra.mxu0 0.0
    %1400 = vmatprep.subr.mxu0 0.0
    %1401 = vmatpush1.msra.mxu0 0.0
    %1402 = vmatprep.mubr.f32.mxu0 0.0
    %1403 = vmatmul.mubr.f32.gmra.mrb[0].mxu0 %v1336
    %v1404 = vpop.f32.mrb[0].mxu0
    %v1405 = vadd.f32 0.0, %v1404
    %v1406 = vpop.f32.mrb[0].mxu0
    %v1407 = vadd.f32 0.0, %v1406
    %1408 = vdwg.mxu0
    %v1409 = vlaneseq
    %v1410 = vshrl.u32 %v1409, 7
    %v1411 = vsub.s32 0, %v1410
    %v1412 = vrot.slane %v1405, %v1411
    %v1413 = vlaneseq
    %v1414 = vshrl.u32 %v1413, 7
    %v1415 = vsub.s32 0, %v1414
    %v1416 = vrot.slane %v1407, %v1415
    %v1417 = vmul.f32 %v977, %v1412
    %v1418 = vmul.f32 %v978, %v1416
    %v1419 = vmul.f32 %v979, %v1412
    %v1420 = vmul.f32 %v980, %v1416
    %v1421 = vmul.f32 %v981, %v1412
    %v1422 = vmul.f32 %v982, %v1416
    %v1423 = vmul.f32 %v983, %v1412
    %v1424 = vmul.f32 %v984, %v1416
    %v1425 = vmul.f32 %v985, %v1412
    %v1426 = vmul.f32 %v986, %v1416
    %v1427 = vmul.f32 %v987, %v1412
    %v1428 = vmul.f32 %v988, %v1416
    %v1429 = vmul.f32 %v989, %v1412
    %v1430 = vmul.f32 %v990, %v1416
    %v1431 = vmul.f32 %v991, %v1412
    %v1432 = vmul.f32 %v992, %v1416
    %v1433 = vmul.f32 %v993, %v1412
    %v1434 = vmul.f32 %v994, %v1416
    %v1435 = vlaneseq
    %v1436 = vshrl.u32 %v1435, 7
    %v1437 = vsub.s32 1, %v1436
    %v1438 = vrot.slane %v1405, %v1437
    %v1439 = vlaneseq
    %v1440 = vshrl.u32 %v1439, 7
    %v1441 = vsub.s32 1, %v1440
    %v1442 = vrot.slane %v1407, %v1441
    %v1443 = vadd.f32 %v1417, %v1438
    %v1444 = vadd.f32 %v1418, %v1442
    %v1445 = vadd.f32 %v1419, %v1438
    %v1446 = vadd.f32 %v1420, %v1442
    %v1447 = vadd.f32 %v1421, %v1438
    %v1448 = vadd.f32 %v1422, %v1442
    %v1449 = vadd.f32 %v1423, %v1438
    %v1450 = vadd.f32 %v1424, %v1442
    %v1451 = vadd.f32 %v1425, %v1438
    %v1452 = vadd.f32 %v1426, %v1442
    %v1453 = vadd.f32 %v1427, %v1438
    %v1454 = vadd.f32 %v1428, %v1442
    %v1455 = vadd.f32 %v1429, %v1438
    %v1456 = vadd.f32 %v1430, %v1442
    %v1457 = vadd.f32 %v1431, %v1438
    %v1458 = vadd.f32 %v1432, %v1442
    %v1459 = vadd.f32 %v1433, %v1438
    %v1460 = vadd.f32 %v1434, %v1442
    %v1461 = vmax.f32 %v1443, 0.0
    %v1462 = vmax.f32 %v1444, 0.0
    %v1463 = vmax.f32 %v1445, 0.0
    %v1464 = vmax.f32 %v1446, 0.0
    %v1465 = vmax.f32 %v1447, 0.0
    %v1466 = vmax.f32 %v1448, 0.0
    %v1467 = vmax.f32 %v1449, 0.0
    %v1468 = vmax.f32 %v1450, 0.0
    %v1469 = vmax.f32 %v1451, 0.0
    %v1470 = vmax.f32 %v1452, 0.0
    %v1471 = vmax.f32 %v1453, 0.0
    %v1472 = vmax.f32 %v1454, 0.0
    %v1473 = vmax.f32 %v1455, 0.0
    %v1474 = vmax.f32 %v1456, 0.0
    %v1475 = vmax.f32 %v1457, 0.0
    %v1476 = vmax.f32 %v1458, 0.0
    %v1477 = vmax.f32 %v1459, 0.0
    %v1478 = vmax.f32 %v1460, 0.0
    %v1479 = vmul.f32 %v1461, %v935
    %v1480 = vmul.f32 %v1462, %v935
    %v1481 = vmul.f32 %v1463, %v940
    %v1482 = vmul.f32 %v1464, %v940
    %v1483 = vmul.f32 %v1465, %v945
    %v1484 = vmul.f32 %v1466, %v945
    %v1485 = vmul.f32 %v1467, %v950
    %v1486 = vmul.f32 %v1468, %v950
    %v1487 = vmul.f32 %v1469, %v955
    %v1488 = vmul.f32 %v1470, %v955
    %v1489 = vmul.f32 %v1471, %v960
    %v1490 = vmul.f32 %v1472, %v960
    %v1491 = vmul.f32 %v1473, %v965
    %v1492 = vmul.f32 %v1474, %v965
    %v1493 = vmul.f32 %v1475, %v970
    %v1494 = vmul.f32 %v1476, %v970
    %v1495 = vmul.f32 %v1477, %v975
    %v1496 = vmul.f32 %v1478, %v975
    %v1497 = vlaneseq
    %vm1498 = vcmp.ge.s32.totalorder %v1497, 0
    %vm1499 = vcmp.lt.s32.totalorder %v1497, 256
    %vm1500 = vmand %vm1498, %vm1499
    %1501 = vst.msk [vmem:[#allocation4] ss:$8 sm:$0x3] %vm1500, 0.0
    %1502 = vst.msk [vmem:[#allocation4] ss:$8 sm:$0x0] %vm1500, 0.0
    %s1503 = scalar_lea.vmem [#allocation4], 133
    %1504 = vst.msk [vmem:[%s1503] ss:$8 sm:$0x3] %vm1500, 0.0
    %1505 = vst.msk [vmem:[%s1503] ss:$8 sm:$0x0] %vm1500, 0.0
    %v1524 = vrot.slane %v1479, 7
    %v1525 = vrot.slane %v1480, 7
    %v1526 = vrot.slane %v1481, 7
    %v1527 = vsel %vm1331, %v1524, %v1526
    %v1528 = vrot.slane %v1482, 7
    %v1529 = vsel %vm1331, %v1525, %v1528
    %v1530 = vrot.slane %v1483, 7
    %v1531 = vsel %vm1331, %v1526, %v1530
    %v1532 = vrot.slane %v1484, 7
    %v1533 = vsel %vm1331, %v1528, %v1532
    %v1534 = vrot.slane %v1485, 7
    %v1535 = vsel %vm1331, %v1530, %v1534
    %v1536 = vrot.slane %v1486, 7
    %v1537 = vsel %vm1331, %v1532, %v1536
    %v1538 = vrot.slane %v1487, 7
    %v1539 = vsel %vm1331, %v1534, %v1538
    %v1540 = vrot.slane %v1488, 7
    %v1541 = vsel %vm1331, %v1536, %v1540
    %v1542 = vrot.slane %v1489, 7
    %v1543 = vsel %vm1331, %v1538, %v1542
    %v1544 = vrot.slane %v1490, 7
    %v1545 = vsel %vm1331, %v1540, %v1544
    %v1546 = vrot.slane %v1491, 7
    %v1547 = vsel %vm1331, %v1542, %v1546
    %v1548 = vrot.slane %v1492, 7
    %v1549 = vsel %vm1331, %v1544, %v1548
    %v1550 = vrot.slane %v1493, 7
    %v1551 = vsel %vm1331, %v1546, %v1550
    %v1552 = vrot.slane %v1494, 7
    %v1553 = vsel %vm1331, %v1548, %v1552
    %v1554 = vrot.slane %v1495, 7
    %v1555 = vsel %vm1331, %v1550, %v1554
    %v1556 = vrot.slane %v1496, 7
    %v1557 = vsel %vm1331, %v1552, %v1556
    %1576 = vst [vmem:[#allocation4] sm:$0xfe] %v1524
    %1577 = vst [vmem:[#allocation4 + $0x8] sm:$0xfe] %v1525
    %1578 = vst [vmem:[#allocation4 + $0x10] sm:$0xff] %v1527
    %1579 = vst [vmem:[#allocation4 + $0x18] sm:$0xff] %v1529
    %1580 = vst [vmem:[#allocation4 + $0x20] sm:$0xff] %v1531
    %1581 = vst [vmem:[#allocation4 + $0x28] sm:$0xff] %v1533
    %1582 = vst [vmem:[#allocation4 + $0x30] sm:$0xff] %v1535
    %1583 = vst [vmem:[#allocation4 + $0x38] sm:$0xff] %v1537
    %1584 = vst [vmem:[#allocation4 + $0x40] sm:$0xff] %v1539
    %1585 = vst [vmem:[#allocation4 + $0x48] sm:$0xff] %v1541
    %1586 = vst [vmem:[#allocation4 + $0x50] sm:$0xff] %v1543
    %1587 = vst [vmem:[#allocation4 + $0x58] sm:$0xff] %v1545
    %1588 = vst [vmem:[#allocation4 + $0x60] sm:$0xff] %v1547
    %1589 = vst [vmem:[#allocation4 + $0x68] sm:$0xff] %v1549
    %1590 = vst [vmem:[#allocation4 + $0x70] sm:$0xff] %v1551
    %1591 = vst [vmem:[#allocation4 + $0x78] sm:$0xff] %v1553
    %1592 = vst [vmem:[#allocation4 + $0x80] sm:$0x1f] %v1555
    %1593 = vst [vmem:[#allocation4 + $0x88] sm:$0x1f] %v1557
    %v1594 = vld [vmem:[#allocation4] sm:$0xff]
    %v1595 = vld [vmem:[#allocation4 + $0x8] sm:$0xff]
    %v1596 = vld [vmem:[#allocation4 + $0x10] sm:$0xff]
    %v1597 = vld [vmem:[#allocation4 + $0x18] sm:$0xff]
    %v1598 = vld [vmem:[#allocation4 + $0x20] sm:$0xff]
    %v1599 = vld [vmem:[#allocation4 + $0x28] sm:$0xff]
    %v1600 = vld [vmem:[#allocation4 + $0x30] sm:$0xff]
    %v1601 = vld [vmem:[#allocation4 + $0x38] sm:$0xff]
    %v1602 = vld [vmem:[#allocation4 + $0x40] sm:$0xff]
    %v1603 = vld [vmem:[#allocation4 + $0x48] sm:$0xff]
    %v1604 = vld [vmem:[#allocation4 + $0x50] sm:$0xff]
    %v1605 = vld [vmem:[#allocation4 + $0x58] sm:$0xff]
    %v1606 = vld [vmem:[#allocation4 + $0x60] sm:$0xff]
    %v1607 = vld [vmem:[#allocation4 + $0x68] sm:$0xff]
    %v1608 = vld [vmem:[#allocation4 + $0x70] sm:$0xff]
    %v1609 = vld [vmem:[#allocation4 + $0x78] sm:$0xff]
    %v1610 = vld [vmem:[#allocation4 + $0x80] sm:$0xf]
    %v1611 = vld [vmem:[#allocation4 + $0x88] sm:$0xf]
    %v1612 = vpack.c.bf16 %v1596, %v1594
    %v1613 = vpack.c.bf16 %v1597, %v1595
    %v1614 = vpack.c.bf16 %v1600, %v1598
    %v1615 = vpack.c.bf16 %v1601, %v1599
    %v1616 = vpack.c.bf16 %v1604, %v1602
    %v1617 = vpack.c.bf16 %v1605, %v1603
    %v1618 = vpack.c.bf16 %v1608, %v1606
    %v1619 = vpack.c.bf16 %v1609, %v1607
    %v1620 = vpack.c.bf16 %v1610, %v1610
    %v1621 = vpack.c.bf16 %v1611, %v1611
    %v1632 = vunpack.c.l.b16 %v1612
    %v1633 = vunpack.c.l.b16 %v1613
    %v1634 = vunpack.c.h.b16 %v1612
    %v1635 = vunpack.c.h.b16 %v1613
    %v1636 = vunpack.c.l.b16 %v1614
    %v1637 = vunpack.c.l.b16 %v1615
    %v1638 = vunpack.c.h.b16 %v1614
    %v1639 = vunpack.c.h.b16 %v1615
    %v1640 = vunpack.c.l.b16 %v1616
    %v1641 = vunpack.c.l.b16 %v1617
    %v1642 = vunpack.c.h.b16 %v1616
    %v1643 = vunpack.c.h.b16 %v1617
    %v1644 = vunpack.c.l.b16 %v1618
    %v1645 = vunpack.c.l.b16 %v1619
    %v1646 = vunpack.c.h.b16 %v1618
    %v1647 = vunpack.c.h.b16 %v1619
    %v1648 = vunpack.c.l.b16 %v1620
    %v1649 = vunpack.c.l.b16 %v1621
    %v1650 = vpack.c.b16 %v1633, %v1632
    %v1651 = vpack.c.b16 %v1635, %v1634
    %v1652 = vpack.c.b16 %v1637, %v1636
    %v1653 = vpack.c.b16 %v1639, %v1638
    %v1654 = vpack.c.b16 %v1641, %v1640
    %v1655 = vpack.c.b16 %v1643, %v1642
    %v1656 = vpack.c.b16 %v1645, %v1644
    %v1657 = vpack.c.b16 %v1647, %v1646
    %v1658 = vpack.c.b16 %v1649, %v1648
    %1668 = vst [vmem:[#allocation5] sm:$0xff] %v1650
    %1669 = vst [vmem:[#allocation5 + $0x18] sm:$0xff] %v1651
    %1670 = vst [vmem:[#allocation5 + $0x30] sm:$0xff] %v1652
    %1671 = vst [vmem:[#allocation5 + $0x48] sm:$0xff] %v1653
    %1672 = vst [vmem:[#allocation5 + $0x60] sm:$0xff] %v1654
    %1673 = vst [vmem:[#allocation5 + $0x78] sm:$0xff] %v1655
    %1674 = vst [vmem:[#allocation5 + $0x90] sm:$0xff] %v1656
    %1675 = vst [vmem:[#allocation5 + $0xa8] sm:$0xff] %v1657
    %1676 = vst [vmem:[#allocation5 + $0xc0] sm:$0x33] %v1658
    %v1677 = vld [vmem:[#allocation4] sm:$0xfe]
    %v1678 = vld [vmem:[#allocation4 + $0x8] sm:$0xfe]
    %v1679 = vld [vmem:[#allocation4 + $0x10] sm:$0xff]
    %v1680 = vld [vmem:[#allocation4 + $0x18] sm:$0xff]
    %v1681 = vld [vmem:[#allocation4 + $0x20] sm:$0xff]
    %v1682 = vld [vmem:[#allocation4 + $0x28] sm:$0xff]
    %v1683 = vld [vmem:[#allocation4 + $0x30] sm:$0xff]
    %v1684 = vld [vmem:[#allocation4 + $0x38] sm:$0xff]
    %v1685 = vld [vmem:[#allocation4 + $0x40] sm:$0xff]
    %v1686 = vld [vmem:[#allocation4 + $0x48] sm:$0xff]
    %v1687 = vld [vmem:[#allocation4 + $0x50] sm:$0xff]
    %v1688 = vld [vmem:[#allocation4 + $0x58] sm:$0xff]
    %v1689 = vld [vmem:[#allocation4 + $0x60] sm:$0xff]
    %v1690 = vld [vmem:[#allocation4 + $0x68] sm:$0xff]
    %v1691 = vld [vmem:[#allocation4 + $0x70] sm:$0xff]
    %v1692 = vld [vmem:[#allocation4 + $0x78] sm:$0xff]
    %v1693 = vld [vmem:[#allocation4 + $0x80] sm:$0x1f]
    %v1694 = vld [vmem:[#allocation4 + $0x88] sm:$0x1f]
    %v1695 = vpack.c.bf16 %v1679, %v1677
    %v1696 = vpack.c.bf16 %v1680, %v1678
    %v1697 = vpack.c.bf16 %v1683, %v1681
    %v1698 = vpack.c.bf16 %v1684, %v1682
    %v1699 = vpack.c.bf16 %v1687, %v1685
    %v1700 = vpack.c.bf16 %v1688, %v1686
    %v1701 = vpack.c.bf16 %v1691, %v1689
    %v1702 = vpack.c.bf16 %v1692, %v1690
    %v1703 = vpack.c.bf16 %v1693, %v1693
    %v1704 = vpack.c.bf16 %v1694, %v1694
    %v1715 = vunpack.c.l.b16 %v1695
    %v1716 = vunpack.c.l.b16 %v1696
    %v1717 = vunpack.c.h.b16 %v1695
    %v1718 = vunpack.c.h.b16 %v1696
    %v1719 = vunpack.c.l.b16 %v1697
    %v1720 = vunpack.c.l.b16 %v1698
    %v1721 = vunpack.c.h.b16 %v1697
    %v1722 = vunpack.c.h.b16 %v1698
    %v1723 = vunpack.c.l.b16 %v1699
    %v1724 = vunpack.c.l.b16 %v1700
    %v1725 = vunpack.c.h.b16 %v1699
    %v1726 = vunpack.c.h.b16 %v1700
    %v1727 = vunpack.c.l.b16 %v1701
    %v1728 = vunpack.c.l.b16 %v1702
    %v1729 = vunpack.c.h.b16 %v1701
    %v1730 = vunpack.c.h.b16 %v1702
    %v1731 = vunpack.c.l.b16 %v1703
    %v1732 = vunpack.c.l.b16 %v1704
    %v1733 = vpack.c.b16 %v1716, %v1715
    %v1734 = vpack.c.b16 %v1718, %v1717
    %v1735 = vpack.c.b16 %v1720, %v1719
    %v1736 = vpack.c.b16 %v1722, %v1721
    %v1737 = vpack.c.b16 %v1724, %v1723
    %v1738 = vpack.c.b16 %v1726, %v1725
    %v1739 = vpack.c.b16 %v1728, %v1727
    %v1740 = vpack.c.b16 %v1730, %v1729
    %v1741 = vpack.c.b16 %v1732, %v1731
    %vm1742 = vsmask.f32 3328
    %vm1743 = vsmask.f32 7440
    %vm1744 = vmor %vm1742, %vm1743
    %v1746 = vshrl.u32 %v1733, 16
    %v1748 = vrot.slane %v1746, 4
    %v1749 = vshll.u32 %v1733, 16
    %v1751 = vrot.slane %v1749, 5
    %v1752 = vor.u32 %v1748, %v1751
    %v1753 = vrot.slane %v1752, 4
    %v1755 = vshll.u32 %v1734, 16
    %v1757 = vrot.slane %v1755, 5
    %v1758 = vsel %vm1744, %v1753, %v1757
    %v1759 = vshrl.u32 %v1734, 16
    %v1761 = vrot.slane %v1759, 4
    %v1762 = vor.u32 %v1761, %v1757
    %v1763 = vrot.slane %v1762, 4
    %v1765 = vshll.u32 %v1735, 16
    %v1767 = vrot.slane %v1765, 5
    %v1768 = vsel %vm1744, %v1763, %v1767
    %v1769 = vshrl.u32 %v1735, 16
    %v1771 = vrot.slane %v1769, 4
    %v1772 = vor.u32 %v1771, %v1767
    %v1773 = vrot.slane %v1772, 4
    %v1775 = vshll.u32 %v1736, 16
    %v1777 = vrot.slane %v1775, 5
    %v1778 = vsel %vm1744, %v1773, %v1777
    %v1779 = vshrl.u32 %v1736, 16
    %v1781 = vrot.slane %v1779, 4
    %v1782 = vor.u32 %v1781, %v1777
    %v1783 = vrot.slane %v1782, 4
    %v1785 = vshll.u32 %v1737, 16
    %v1787 = vrot.slane %v1785, 5
    %v1788 = vsel %vm1744, %v1783, %v1787
    %v1789 = vshrl.u32 %v1737, 16
    %v1791 = vrot.slane %v1789, 4
    %v1792 = vor.u32 %v1791, %v1787
    %v1793 = vrot.slane %v1792, 4
    %v1795 = vshll.u32 %v1738, 16
    %v1797 = vrot.slane %v1795, 5
    %v1798 = vsel %vm1744, %v1793, %v1797
    %v1799 = vshrl.u32 %v1738, 16
    %v1801 = vrot.slane %v1799, 4
    %v1802 = vor.u32 %v1801, %v1797
    %v1803 = vrot.slane %v1802, 4
    %v1805 = vshll.u32 %v1739, 16
    %v1807 = vrot.slane %v1805, 5
    %v1808 = vsel %vm1744, %v1803, %v1807
    %v1809 = vshrl.u32 %v1739, 16
    %v1811 = vrot.slane %v1809, 4
    %v1812 = vor.u32 %v1811, %v1807
    %v1813 = vrot.slane %v1812, 4
    %v1815 = vshll.u32 %v1740, 16
    %v1817 = vrot.slane %v1815, 5
    %v1818 = vsel %vm1744, %v1813, %v1817
    %v1819 = vshrl.u32 %v1740, 16
    %v1821 = vrot.slane %v1819, 4
    %v1822 = vor.u32 %v1821, %v1817
    %v1823 = vrot.slane %v1822, 4
    %v1825 = vshll.u32 %v1741, 16
    %v1827 = vrot.slane %v1825, 5
    %v1828 = vsel %vm1744, %v1823, %v1827
    %v1829 = vshrl.u32 %v1741, 16
    %v1831 = vrot.slane %v1829, 4
    %v1832 = vor.u32 %v1831, %v1827
    %v1833 = vrot.slane %v1832, 4
    %1843 = vst [vmem:[#allocation5 + $0x8] sm:$0xff] %v1758
    %1844 = vst [vmem:[#allocation5 + $0x20] sm:$0xff] %v1768
    %1845 = vst [vmem:[#allocation5 + $0x38] sm:$0xff] %v1778
    %1846 = vst [vmem:[#allocation5 + $0x50] sm:$0xff] %v1788
    %1847 = vst [vmem:[#allocation5 + $0x68] sm:$0xff] %v1798
    %1848 = vst [vmem:[#allocation5 + $0x80] sm:$0xff] %v1808
    %1849 = vst [vmem:[#allocation5 + $0x98] sm:$0xff] %v1818
    %1850 = vst [vmem:[#allocation5 + $0xb0] sm:$0xff] %v1828
    %1851 = vst [vmem:[#allocation5 + $0xc8] sm:$0x33] %v1833
    %v1852 = vld [vmem:[#allocation4] sm:$0xfc]
    %v1853 = vld [vmem:[#allocation4 + $0x8] sm:$0xfc]
    %v1854 = vld [vmem:[#allocation4 + $0x10] sm:$0xff]
    %v1855 = vld [vmem:[#allocation4 + $0x18] sm:$0xff]
    %v1856 = vld [vmem:[#allocation4 + $0x20] sm:$0xff]
    %v1857 = vld [vmem:[#allocation4 + $0x28] sm:$0xff]
    %v1858 = vld [vmem:[#allocation4 + $0x30] sm:$0xff]
    %v1859 = vld [vmem:[#allocation4 + $0x38] sm:$0xff]
    %v1860 = vld [vmem:[#allocation4 + $0x40] sm:$0xff]
    %v1861 = vld [vmem:[#allocation4 + $0x48] sm:$0xff]
    %v1862 = vld [vmem:[#allocation4 + $0x50] sm:$0xff]
    %v1863 = vld [vmem:[#allocation4 + $0x58] sm:$0xff]
    %v1864 = vld [vmem:[#allocation4 + $0x60] sm:$0xff]
    %v1865 = vld [vmem:[#allocation4 + $0x68] sm:$0xff]
    %v1866 = vld [vmem:[#allocation4 + $0x70] sm:$0xff]
    %v1867 = vld [vmem:[#allocation4 + $0x78] sm:$0xff]
    %v1868 = vld [vmem:[#allocation4 + $0x80] sm:$0x3f]
    %v1869 = vld [vmem:[#allocation4 + $0x88] sm:$0x3f]
    %v1870 = vpack.c.bf16 %v1854, %v1852
    %v1871 = vpack.c.bf16 %v1855, %v1853
    %v1872 = vpack.c.bf16 %v1858, %v1856
    %v1873 = vpack.c.bf16 %v1859, %v1857
    %v1874 = vpack.c.bf16 %v1862, %v1860
    %v1875 = vpack.c.bf16 %v1863, %v1861
    %v1876 = vpack.c.bf16 %v1866, %v1864
    %v1877 = vpack.c.bf16 %v1867, %v1865
    %v1878 = vpack.c.bf16 %v1868, %v1868
    %v1879 = vpack.c.bf16 %v1869, %v1869
    %v1890 = vunpack.c.l.b16 %v1870
    %v1891 = vunpack.c.l.b16 %v1871
    %v1892 = vunpack.c.h.b16 %v1870
    %v1893 = vunpack.c.h.b16 %v1871
    %v1894 = vunpack.c.l.b16 %v1872
    %v1895 = vunpack.c.l.b16 %v1873
    %v1896 = vunpack.c.h.b16 %v1872
    %v1897 = vunpack.c.h.b16 %v1873
    %v1898 = vunpack.c.l.b16 %v1874
    %v1899 = vunpack.c.l.b16 %v1875
    %v1900 = vunpack.c.h.b16 %v1874
    %v1901 = vunpack.c.h.b16 %v1875
    %v1902 = vunpack.c.l.b16 %v1876
    %v1903 = vunpack.c.l.b16 %v1877
    %v1904 = vunpack.c.h.b16 %v1876
    %v1905 = vunpack.c.h.b16 %v1877
    %v1906 = vunpack.c.l.b16 %v1878
    %v1907 = vunpack.c.l.b16 %v1879
    %v1908 = vpack.c.b16 %v1891, %v1890
    %v1909 = vpack.c.b16 %v1893, %v1892
    %v1910 = vpack.c.b16 %v1895, %v1894
    %v1911 = vpack.c.b16 %v1897, %v1896
    %v1912 = vpack.c.b16 %v1899, %v1898
    %v1913 = vpack.c.b16 %v1901, %v1900
    %v1914 = vpack.c.b16 %v1903, %v1902
    %v1915 = vpack.c.b16 %v1905, %v1904
    %v1916 = vpack.c.b16 %v1907, %v1906
    %vm1917 = vcmask 1042432
    %vm1918 = vcmask 1046532
    %vm1919 = vmor %vm1917, %vm1918
    %v1920 = vrot.slane %v1908, 5
    %v1921 = vrot.slane %v1920, 4
    %v1922 = vrot.slane %v1909, 5
    %v1923 = vsel %vm1919, %v1921, %v1922
    %v1924 = vrot.slane %v1922, 4
    %v1925 = vrot.slane %v1910, 5
    %v1926 = vsel %vm1919, %v1924, %v1925
    %v1927 = vrot.slane %v1925, 4
    %v1928 = vrot.slane %v1911, 5
    %v1929 = vsel %vm1919, %v1927, %v1928
    %v1930 = vrot.slane %v1928, 4
    %v1931 = vrot.slane %v1912, 5
    %v1932 = vsel %vm1919, %v1930, %v1931
    %v1933 = vrot.slane %v1931, 4
    %v1934 = vrot.slane %v1913, 5
    %v1935 = vsel %vm1919, %v1933, %v1934
    %v1936 = vrot.slane %v1934, 4
    %v1937 = vrot.slane %v1914, 5
    %v1938 = vsel %vm1919, %v1936, %v1937
    %v1939 = vrot.slane %v1937, 4
    %v1940 = vrot.slane %v1915, 5
    %v1941 = vsel %vm1919, %v1939, %v1940
    %v1942 = vrot.slane %v1940, 4
    %v1943 = vrot.slane %v1916, 5
    %v1944 = vsel %vm1919, %v1942, %v1943
    %v1945 = vrot.slane %v1943, 4
    %1955 = vst [vmem:[#allocation5 + $0x10] sm:$0xff] %v1923
    %1956 = vst [vmem:[#allocation5 + $0x28] sm:$0xff] %v1926
    %1957 = vst [vmem:[#allocation5 + $0x40] sm:$0xff] %v1929
    %1958 = vst [vmem:[#allocation5 + $0x58] sm:$0xff] %v1932
    %1959 = vst [vmem:[#allocation5 + $0x70] sm:$0xff] %v1935
    %1960 = vst [vmem:[#allocation5 + $0x88] sm:$0xff] %v1938
    %1961 = vst [vmem:[#allocation5 + $0xa0] sm:$0xff] %v1941
    %1962 = vst [vmem:[#allocation5 + $0xb8] sm:$0xff] %v1944
    %1963 = vst [vmem:[#allocation5 + $0xd0] sm:$0x33] %v1945
    %s1964 = smul.u32 4, 96
    %s1965 = smul.u32 %s1964, 2
    %s1966 = sshll.u32 %s1965, 4
    %1967 = dma.done [#allocation7], %s1966
    %v1968 = vld [vmem:[#allocation5] sm:$0xff]
    %v1969 = vld [vmem:[#allocation5 + $0x8] sm:$0xff]
    %v1970 = vld [vmem:[#allocation5 + $0x10] sm:$0xff]
    %v1971 = vld [vmem:[#allocation5 + $0x18] sm:$0xff]
    %v1972 = vld [vmem:[#allocation5 + $0x20] sm:$0xff]
    %v1973 = vld [vmem:[#allocation5 + $0x28] sm:$0xff]
    %v1974 = vld [vmem:[#allocation5 + $0x30] sm:$0xff]
    %v1975 = vld [vmem:[#allocation5 + $0x38] sm:$0xff]
    %v1976 = vld [vmem:[#allocation5 + $0x40] sm:$0xff]
    %v1977 = vld [vmem:[#allocation5 + $0x48] sm:$0xff]
    %v1978 = vld [vmem:[#allocation5 + $0x50] sm:$0xff]
    %v1979 = vld [vmem:[#allocation5 + $0x58] sm:$0xff]
    %v1980 = vld [vmem:[#allocation5 + $0x60] sm:$0xff]
    %v1981 = vld [vmem:[#allocation5 + $0x68] sm:$0xff]
    %v1982 = vld [vmem:[#allocation5 + $0x70] sm:$0xff]
    %v1983 = vld [vmem:[#allocation5 + $0x78] sm:$0xff]
    %v1984 = vld [vmem:[#allocation5 + $0x80] sm:$0xff]
    %v1985 = vld [vmem:[#allocation5 + $0x88] sm:$0xff]
    %v1986 = vld [vmem:[#allocation5 + $0x90] sm:$0xff]
    %v1987 = vld [vmem:[#allocation5 + $0x98] sm:$0xff]
    %v1988 = vld [vmem:[#allocation5 + $0xa0] sm:$0xff]
    %v1989 = vld [vmem:[#allocation5 + $0xa8] sm:$0xff]
    %v1990 = vld [vmem:[#allocation5 + $0xb0] sm:$0xff]
    %v1991 = vld [vmem:[#allocation5 + $0xb8] sm:$0xff]
    %v1992 = vld [vmem:[#allocation5 + $0xc0] sm:$0x33]
    %v1993 = vld [vmem:[#allocation5 + $0xc8] sm:$0x33]
    %v1994 = vld [vmem:[#allocation5 + $0xd0] sm:$0x33]
    %v1995 = vld [vmem:[#allocation6] sm:$0xff]
    %v1996 = vld [vmem:[#allocation6 + $0x8] sm:$0xff]
    %v1997 = vld [vmem:[#allocation6 + $0x10] sm:$0xff]
    %v1998 = vld [vmem:[#allocation6 + $0x18] sm:$0xff]
    %v1999 = vld [vmem:[#allocation6 + $0x20] sm:$0xff]
    %v2000 = vld [vmem:[#allocation6 + $0x28] sm:$0xff]
    %v2001 = vld [vmem:[#allocation6 + $0x30] sm:$0xff]
    %v2002 = vld [vmem:[#allocation6 + $0x38] sm:$0xff]
    %v2003 = vld [vmem:[#allocation6 + $0x40] sm:$0xff]
    %v2004 = vld [vmem:[#allocation6 + $0x48] sm:$0xff]
    %v2005 = vld [vmem:[#allocation6 + $0x50] sm:$0xff]
    %v2006 = vld [vmem:[#allocation6 + $0x58] sm:$0xff]
    %v2007 = vld [vmem:[#allocation6 + $0x60] sm:$0xff]
    %v2008 = vld [vmem:[#allocation6 + $0x68] sm:$0xff]
    %v2009 = vld [vmem:[#allocation6 + $0x70] sm:$0xff]
    %v2010 = vld [vmem:[#allocation6 + $0x78] sm:$0xff]
    %v2011 = vld [vmem:[#allocation6 + $0x80] sm:$0xff]
    %v2012 = vld [vmem:[#allocation6 + $0x88] sm:$0xff]
    %v2013 = vld [vmem:[#allocation6 + $0x90] sm:$0xff]
    %v2014 = vld [vmem:[#allocation6 + $0x98] sm:$0xff]
    %v2015 = vld [vmem:[#allocation6 + $0xa0] sm:$0xff]
    %v2016 = vld [vmem:[#allocation6 + $0xa8] sm:$0xff]
    %v2017 = vld [vmem:[#allocation6 + $0xb0] sm:$0xff]
    %v2018 = vld [vmem:[#allocation6 + $0xb8] sm:$0xff]
    %v2019 = vld [vmem:[#allocation6 + $0xc0] sm:$0xff]
    %v2020 = vld [vmem:[#allocation6 + $0xc8] sm:$0xff]
    %v2021 = vld [vmem:[#allocation6 + $0xd0] sm:$0xff]
    %v2022 = vld [vmem:[#allocation6 + $0xd8] sm:$0xff]
    %v2023 = vld [vmem:[#allocation6 + $0xe0] sm:$0xff]
    %v2024 = vld [vmem:[#allocation6 + $0xe8] sm:$0xff]
    %v2025 = vld [vmem:[#allocation6 + $0xf0] sm:$0xff]
    %v2026 = vld [vmem:[#allocation6 + $0xf8] sm:$0xff]
    %v2027 = vld [vmem:[#allocation6 + $0x100] sm:$0xff]
    %v2028 = vld [vmem:[#allocation6 + $0x108] sm:$0xff]
    %v2029 = vld [vmem:[#allocation6 + $0x110] sm:$0xff]
    %v2030 = vld [vmem:[#allocation6 + $0x118] sm:$0xff]
    %v2031 = vld [vmem:[#allocation6 + $0x120] sm:$0xff]
    %v2032 = vld [vmem:[#allocation6 + $0x128] sm:$0xff]
    %v2033 = vld [vmem:[#allocation6 + $0x130] sm:$0xff]
    %v2034 = vld [vmem:[#allocation6 + $0x138] sm:$0xff]
    %v2035 = vld [vmem:[#allocation6 + $0x140] sm:$0xff]
    %v2036 = vld [vmem:[#allocation6 + $0x148] sm:$0xff]
    %v2037 = vld [vmem:[#allocation6 + $0x150] sm:$0xff]
    %v2038 = vld [vmem:[#allocation6 + $0x158] sm:$0xff]
    %v2039 = vld [vmem:[#allocation6 + $0x160] sm:$0xff]
    %v2040 = vld [vmem:[#allocation6 + $0x168] sm:$0xff]
    %v2041 = vld [vmem:[#allocation6 + $0x170] sm:$0xff]
    %v2042 = vld [vmem:[#allocation6 + $0x178] sm:$0xff]
    %v2043 = vld [vmem:[#allocation6 + $0x180] sm:$0xff]
    %v2044 = vld [vmem:[#allocation6 + $0x188] sm:$0xff]
    %v2045 = vld [vmem:[#allocation6 + $0x190] sm:$0xff]
    %v2046 = vld [vmem:[#allocation6 + $0x198] sm:$0xff]
    %v2047 = vld [vmem:[#allocation6 + $0x1a0] sm:$0xff]
    %v2048 = vld [vmem:[#allocation6 + $0x1a8] sm:$0xff]
    %v2049 = vld [vmem:[#allocation6 + $0x1b0] sm:$0xff]
    %v2050 = vld [vmem:[#allocation6 + $0x1b8] sm:$0xff]
    %v2051 = vld [vmem:[#allocation6 + $0x1c0] sm:$0xff]
    %v2052 = vld [vmem:[#allocation6 + $0x1c8] sm:$0xff]
    %v2053 = vld [vmem:[#allocation6 + $0x1d0] sm:$0xff]
    %v2054 = vld [vmem:[#allocation6 + $0x1d8] sm:$0xff]
    %v2055 = vld [vmem:[#allocation6 + $0x1e0] sm:$0xff]
    %v2056 = vld [vmem:[#allocation6 + $0x1e8] sm:$0xff]
    %v2057 = vld [vmem:[#allocation6 + $0x1f0] sm:$0xff]
    %v2058 = vld [vmem:[#allocation6 + $0x1f8] sm:$0xff]
    %v2059 = vld [vmem:[#allocation6 + $0x200] sm:$0xff]
    %v2060 = vld [vmem:[#allocation6 + $0x208] sm:$0xff]
    %v2061 = vld [vmem:[#allocation6 + $0x210] sm:$0xff]
    %v2062 = vld [vmem:[#allocation6 + $0x218] sm:$0xff]
    %v2063 = vld [vmem:[#allocation6 + $0x220] sm:$0xff]
    %v2064 = vld [vmem:[#allocation6 + $0x228] sm:$0xff]
    %v2065 = vld [vmem:[#allocation6 + $0x230] sm:$0xff]
    %v2066 = vld [vmem:[#allocation6 + $0x238] sm:$0xff]
    %v2067 = vld [vmem:[#allocation6 + $0x240] sm:$0xff]
    %v2068 = vld [vmem:[#allocation6 + $0x248] sm:$0xff]
    %v2069 = vld [vmem:[#allocation6 + $0x250] sm:$0xff]
    %v2070 = vld [vmem:[#allocation6 + $0x258] sm:$0xff]
    %v2071 = vld [vmem:[#allocation6 + $0x260] sm:$0xff]
    %v2072 = vld [vmem:[#allocation6 + $0x268] sm:$0xff]
    %v2073 = vld [vmem:[#allocation6 + $0x270] sm:$0xff]
    %v2074 = vld [vmem:[#allocation6 + $0x278] sm:$0xff]
    %v2075 = vld [vmem:[#allocation6 + $0x280] sm:$0xff]
    %v2076 = vld [vmem:[#allocation6 + $0x288] sm:$0xff]
    %v2077 = vld [vmem:[#allocation6 + $0x290] sm:$0xff]
    %v2078 = vld [vmem:[#allocation6 + $0x298] sm:$0xff]
    %v2079 = vld [vmem:[#allocation6 + $0x2a0] sm:$0xff]
    %v2080 = vld [vmem:[#allocation6 + $0x2a8] sm:$0xff]
    %v2081 = vld [vmem:[#allocation6 + $0x2b0] sm:$0xff]
    %v2082 = vld [vmem:[#allocation6 + $0x2b8] sm:$0xff]
    %v2083 = vld [vmem:[#allocation6 + $0x2c0] sm:$0xff]
    %v2084 = vld [vmem:[#allocation6 + $0x2c8] sm:$0xff]
    %v2085 = vld [vmem:[#allocation6 + $0x2d0] sm:$0xff]
    %v2086 = vld [vmem:[#allocation6 + $0x2d8] sm:$0xff]
    %v2087 = vld [vmem:[#allocation6 + $0x2e0] sm:$0xff]
    %v2088 = vld [vmem:[#allocation6 + $0x2e8] sm:$0xff]
    %v2089 = vld [vmem:[#allocation6 + $0x2f0] sm:$0xff]
    %v2090 = vld [vmem:[#allocation6 + $0x2f8] sm:$0xff]
    %v2091 = vld [vmem:[%s0 + $0x1] sm:$0xff]
    %v2092 = vld [vmem:[%s0 + $0x9] sm:$0xff]
    %v2093 = vld [vmem:[%s0 + $0x11] sm:$0xff]
    %v2094 = vld [vmem:[%s0 + $0x19] sm:$0xff]
    %v2095 = vld [vmem:[%s0 + $0x21] sm:$0xff]
    %v2096 = vld [vmem:[%s0 + $0x29] sm:$0xff]
    %v2097 = vld [vmem:[%s0 + $0x31] sm:$0xff]
    %v2098 = vld [vmem:[%s0 + $0x39] sm:$0xff]
    %v2099 = vld [vmem:[%s0 + $0x41] sm:$0xf]
    %v2100 = vpack.c.bf16 %v2092, %v2091
    %v2101 = vpack.c.bf16 %v2094, %v2093
    %v2102 = vpack.c.bf16 %v2096, %v2095
    %v2103 = vpack.c.bf16 %v2098, %v2097
    %v2104 = vpack.c.bf16 %v2099, %v2099
    %v2105 = vld [vmem:[%s9] sm:$0xff]
    %v2106 = vld [vmem:[%s9 + $0x8] sm:$0xff]
    %v2107 = vld [vmem:[%s9 + $0x10] sm:$0xff]
    %v2108 = vld [vmem:[%s9 + $0x18] sm:$0xff]
    %v2109 = vld [vmem:[%s9 + $0x20] sm:$0xff]
    %v2110 = vld [vmem:[%s9 + $0x28] sm:$0xff]
    %v2111 = vld [vmem:[%s9 + $0x30] sm:$0xff]
    %v2112 = vld [vmem:[%s9 + $0x38] sm:$0xff]
    %v2113 = vld [vmem:[%s9 + $0x40] sm:$0xff]
    %v2114 = vld [vmem:[%s9 + $0x48] sm:$0xff]
    %v2115 = vld [vmem:[%s9 + $0x50] sm:$0xff]
    %v2116 = vld [vmem:[%s9 + $0x58] sm:$0xff]
    %v2117 = vld [vmem:[%s9 + $0x60] sm:$0xff]
    %v2118 = vld [vmem:[%s9 + $0x68] sm:$0xff]
    %v2119 = vld [vmem:[%s9 + $0x70] sm:$0xff]
    %v2120 = vld [vmem:[%s9 + $0x78] sm:$0xff]
    %v2137 = vunpack.c.l.b16 %v2105
    %v2138 = vunpack.c.h.b16 %v2105
    %v2139 = vunpack.c.l.b16 %v2106
    %v2140 = vunpack.c.h.b16 %v2106
    %v2141 = vunpack.c.l.b16 %v2107
    %v2142 = vunpack.c.h.b16 %v2107
    %v2143 = vunpack.c.l.b16 %v2108
    %v2144 = vunpack.c.h.b16 %v2108
    %v2145 = vunpack.c.l.b16 %v2109
    %v2146 = vunpack.c.h.b16 %v2109
    %v2147 = vunpack.c.l.b16 %v2110
    %v2148 = vunpack.c.h.b16 %v2110
    %v2149 = vunpack.c.l.b16 %v2111
    %v2150 = vunpack.c.h.b16 %v2111
    %v2151 = vunpack.c.l.b16 %v2112
    %v2152 = vunpack.c.h.b16 %v2112
    %v2153 = vunpack.c.l.b16 %v2113
    %v2154 = vunpack.c.h.b16 %v2113
    %v2155 = vunpack.c.l.b16 %v2114
    %v2156 = vunpack.c.h.b16 %v2114
    %v2157 = vunpack.c.l.b16 %v2115
    %v2158 = vunpack.c.h.b16 %v2115
    %v2159 = vunpack.c.l.b16 %v2116
    %v2160 = vunpack.c.h.b16 %v2116
    %v2161 = vunpack.c.l.b16 %v2117
    %v2162 = vunpack.c.h.b16 %v2117
    %v2163 = vunpack.c.l.b16 %v2118
    %v2164 = vunpack.c.h.b16 %v2118
    %v2165 = vunpack.c.l.b16 %v2119
    %v2166 = vunpack.c.h.b16 %v2119
    %v2167 = vunpack.c.l.b16 %v2120
    %v2168 = vunpack.c.h.b16 %v2120
    %v2169 = vpack.c.b16 %v2139, %v2137
    %v2170 = vpack.c.b16 %v2140, %v2138
    %v2171 = vpack.c.b16 %v2143, %v2141
    %v2172 = vpack.c.b16 %v2144, %v2142
    %v2173 = vpack.c.b16 %v2147, %v2145
    %v2174 = vpack.c.b16 %v2148, %v2146
    %v2175 = vpack.c.b16 %v2151, %v2149
    %v2176 = vpack.c.b16 %v2152, %v2150
    %v2177 = vpack.c.b16 %v2155, %v2153
    %v2178 = vpack.c.b16 %v2156, %v2154
    %v2179 = vpack.c.b16 %v2159, %v2157
    %v2180 = vpack.c.b16 %v2160, %v2158
    %v2181 = vpack.c.b16 %v2163, %v2161
    %v2182 = vpack.c.b16 %v2164, %v2162
    %v2183 = vpack.c.b16 %v2167, %v2165
    %v2184 = vpack.c.b16 %v2168, %v2166
    %2201 = vmatprep.subr.bf16.mxu0 %v2170
    %2202 = vmatpush1.bf16.msra.mxu0 %v2169
    %2203 = vmatprep.subr.bf16.mxu0 %v2172
    %2204 = vmatpush1.bf16.msra.mxu0 %v2171
    %2205 = vmatprep.subr.bf16.mxu0 %v2174
    %2206 = vmatpush1.bf16.msra.mxu0 %v2173
    %2207 = vmatprep.subr.bf16.mxu0 %v2176
    %2208 = vmatpush1.bf16.msra.mxu0 %v2175
    %2209 = vmatprep.subr.bf16.mxu0 %v2178
    %2210 = vmatpush1.bf16.msra.mxu0 %v2177
    %2211 = vmatprep.subr.bf16.mxu0 %v2180
    %2212 = vmatpush1.bf16.msra.mxu0 %v2179
    %2213 = vmatprep.subr.bf16.mxu0 %v2182
    %2214 = vmatpush1.bf16.msra.mxu0 %v2181
    %2215 = vmatprep.subr.bf16.mxu0 %v2184
    %2216 = vmatpush1.bf16.msra.mxu0 %v2183
    %2217 = vmatprep.subr.bf16.mxu0 0
    %2218 = vmatpush1.bf16.msra.mxu0 0
    %2219 = vmatprep.subr.bf16.mxu0 0
    %2220 = vmatpush1.bf16.msra.mxu0 0
    %2221 = vmatprep.subr.bf16.mxu0 0
    %2222 = vmatpush1.bf16.msra.mxu0 0
    %2223 = vmatprep.subr.bf16.mxu0 0
    %2224 = vmatpush1.bf16.msra.mxu0 0
    %2225 = vmatprep.subr.bf16.mxu0 0
    %2226 = vmatpush1.bf16.msra.mxu0 0
    %2227 = vmatprep.subr.bf16.mxu0 0
    %2228 = vmatpush1.bf16.msra.mxu0 0
    %2229 = vmatprep.subr.bf16.mxu0 0
    %2230 = vmatpush1.bf16.msra.mxu0 0
    %2231 = vmatprep.subr.bf16.mxu0 0
    %2232 = vmatpush1.bf16.msra.mxu0 0
    %2233 = vmatprep.mubr.bf16.mxu0 0
    %2234 = vmatmul.mubr.bf16.gmra.mrb[0].mxu0 %v2100
    %v2235 = vpop.f32.mrb[0].mxu0
    %v2236 = vadd.f32 0.0, %v2235
    %v2237 = vpop.f32.mrb[0].mxu0
    %v2238 = vadd.f32 0.0, %v2237
    %v2239 = vpop.f32.mrb[0].mxu0
    %v2240 = vadd.f32 0.0, %v2239
    %v2241 = vpop.f32.mrb[0].mxu0
    %v2242 = vadd.f32 0.0, %v2241
    %2243 = vmatprep.mubr.bf16.mxu0 0
    %2244 = vmatmul.mubr.bf16.gmra.mrb[0].mxu0 %v2101
    %v2245 = vpop.f32.mrb[0].mxu0
    %v2246 = vadd.f32 0.0, %v2245
    %v2247 = vpop.f32.mrb[0].mxu0
    %v2248 = vadd.f32 0.0, %v2247
    %v2249 = vpop.f32.mrb[0].mxu0
    %v2250 = vadd.f32 0.0, %v2249
    %v2251 = vpop.f32.mrb[0].mxu0
    %v2252 = vadd.f32 0.0, %v2251
    %2253 = vmatprep.mubr.bf16.mxu0 0
    %2254 = vmatmul.mubr.bf16.gmra.mrb[0].mxu0 %v2102
    %v2255 = vpop.f32.mrb[0].mxu0
    %v2256 = vadd.f32 0.0, %v2255
    %v2257 = vpop.f32.mrb[0].mxu0
    %v2258 = vadd.f32 0.0, %v2257
    %v2259 = vpop.f32.mrb[0].mxu0
    %v2260 = vadd.f32 0.0, %v2259
    %v2261 = vpop.f32.mrb[0].mxu0
    %v2262 = vadd.f32 0.0, %v2261
    %2263 = vmatprep.mubr.bf16.mxu0 0
    %2264 = vmatmul.mubr.bf16.gmra.mrb[0].mxu0 %v2103
    %v2265 = vpop.f32.mrb[0].mxu0
    %v2266 = vadd.f32 0.0, %v2265
    %v2267 = vpop.f32.mrb[0].mxu0
    %v2268 = vadd.f32 0.0, %v2267
    %v2269 = vpop.f32.mrb[0].mxu0
    %v2270 = vadd.f32 0.0, %v2269
    %v2271 = vpop.f32.mrb[0].mxu0
    %v2272 = vadd.f32 0.0, %v2271
    %2273 = vmatprep.mubr.bf16.mxu0 0
    %2274 = vmatmul.mubr.bf16.gmra.mrb[0].mxu0 %v2104
    %v2275 = vpop.f32.mrb[0].mxu0
    %v2276 = vadd.f32 0.0, %v2275
    %v2277 = vpop.f32.mrb[0].mxu0
    %v2278 = vadd.f32 0.0, %v2277
    %v2279 = vpop.f32.mrb[0].mxu0
    %v2280 = vpop.f32.mrb[0].mxu0
    %2281 = vdwg.mxu0
    %v2309 = vunpack.c.l.b16 %v1968
    %v2310 = vunpack.c.h.b16 %v1968
    %v2311 = vunpack.c.l.b16 %v1969
    %v2312 = vunpack.c.h.b16 %v1969
    %v2313 = vunpack.c.l.b16 %v1970
    %v2314 = vunpack.c.h.b16 %v1970
    %v2315 = vunpack.c.l.b16 %v1971
    %v2316 = vunpack.c.h.b16 %v1971
    %v2317 = vunpack.c.l.b16 %v1972
    %v2318 = vunpack.c.h.b16 %v1972
    %v2319 = vunpack.c.l.b16 %v1973
    %v2320 = vunpack.c.h.b16 %v1973
    %v2321 = vunpack.c.l.b16 %v1974
    %v2322 = vunpack.c.h.b16 %v1974
    %v2323 = vunpack.c.l.b16 %v1975
    %v2324 = vunpack.c.h.b16 %v1975
    %v2325 = vunpack.c.l.b16 %v1976
    %v2326 = vunpack.c.h.b16 %v1976
    %v2327 = vunpack.c.l.b16 %v1977
    %v2328 = vunpack.c.h.b16 %v1977
    %v2329 = vunpack.c.l.b16 %v1978
    %v2330 = vunpack.c.h.b16 %v1978
    %v2331 = vunpack.c.l.b16 %v1979
    %v2332 = vunpack.c.h.b16 %v1979
    %v2333 = vunpack.c.l.b16 %v1980
    %v2334 = vunpack.c.h.b16 %v1980
    %v2335 = vunpack.c.l.b16 %v1981
    %v2336 = vunpack.c.h.b16 %v1981
    %v2337 = vunpack.c.l.b16 %v1982
    %v2338 = vunpack.c.h.b16 %v1982
    %v2339 = vunpack.c.l.b16 %v1983
    %v2340 = vunpack.c.h.b16 %v1983
    %v2341 = vunpack.c.l.b16 %v1984
    %v2342 = vunpack.c.h.b16 %v1984
    %v2343 = vunpack.c.l.b16 %v1985
    %v2344 = vunpack.c.h.b16 %v1985
    %v2345 = vunpack.c.l.b16 %v1986
    %v2346 = vunpack.c.h.b16 %v1986
    %v2347 = vunpack.c.l.b16 %v1987
    %v2348 = vunpack.c.h.b16 %v1987
    %v2349 = vunpack.c.l.b16 %v1988
    %v2350 = vunpack.c.h.b16 %v1988
    %v2351 = vunpack.c.l.b16 %v1989
    %v2352 = vunpack.c.h.b16 %v1989
    %v2353 = vunpack.c.l.b16 %v1990
    %v2354 = vunpack.c.h.b16 %v1990
    %v2355 = vunpack.c.l.b16 %v1991
    %v2356 = vunpack.c.h.b16 %v1991
    %v2357 = vunpack.c.l.b16 %v1992
    %v2358 = vunpack.c.h.b16 %v1992
    %v2359 = vunpack.c.l.b16 %v1993
    %v2360 = vunpack.c.h.b16 %v1993
    %v2361 = vunpack.c.l.b16 %v1994
    %v2362 = vunpack.c.h.b16 %v1994
    %v2363 = vpack.c.b16 %v2315, %v2309
    %v2364 = vpack.c.b16 %v2316, %v2310
    %v2365 = vpack.c.b16 %v2317, %v2311
    %v2366 = vpack.c.b16 %v2318, %v2312
    %v2367 = vpack.c.b16 %v2319, %v2313
    %v2368 = vpack.c.b16 %v2320, %v2314
    %v2369 = vpack.c.b16 %v2327, %v2321
    %v2370 = vpack.c.b16 %v2328, %v2322
    %v2371 = vpack.c.b16 %v2329, %v2323
    %v2372 = vpack.c.b16 %v2330, %v2324
    %v2373 = vpack.c.b16 %v2331, %v2325
    %v2374 = vpack.c.b16 %v2332, %v2326
    %v2375 = vpack.c.b16 %v2339, %v2333
    %v2376 = vpack.c.b16 %v2340, %v2334
    %v2377 = vpack.c.b16 %v2341, %v2335
    %v2378 = vpack.c.b16 %v2342, %v2336
    %v2379 = vpack.c.b16 %v2343, %v2337
    %v2380 = vpack.c.b16 %v2344, %v2338
    %v2381 = vpack.c.b16 %v2351, %v2345
    %v2382 = vpack.c.b16 %v2352, %v2346
    %v2383 = vpack.c.b16 %v2353, %v2347
    %v2384 = vpack.c.b16 %v2354, %v2348
    %v2385 = vpack.c.b16 %v2355, %v2349
    %v2386 = vpack.c.b16 %v2356, %v2350
    %v2387 = vpack.c.b16 %v2357, %v2357
    %v2388 = vpack.c.b16 %v2358, %v2358
    %v2389 = vpack.c.b16 %v2359, %v2359
    %v2390 = vpack.c.b16 %v2360, %v2360
    %v2391 = vpack.c.b16 %v2361, %v2361
    %v2392 = vpack.c.b16 %v2362, %v2362
    %2423 = vmatprep.subr.bf16.mxu0 %v1996
    %2424 = vmatpush1.bf16.msra.mxu0 %v1995
    %2425 = vmatprep.subr.bf16.mxu0 %v1998
    %2426 = vmatpush1.bf16.msra.mxu0 %v1997
    %2427 = vmatprep.subr.bf16.mxu0 %v2000
    %2428 = vmatpush1.bf16.msra.mxu0 %v1999
    %2429 = vmatprep.subr.bf16.mxu0 %v2002
    %2430 = vmatpush1.bf16.msra.mxu0 %v2001
    %2431 = vmatprep.subr.bf16.mxu0 %v2004
    %2432 = vmatpush1.bf16.msra.mxu0 %v2003
    %2433 = vmatprep.subr.bf16.mxu0 %v2006
    %2434 = vmatpush1.bf16.msra.mxu0 %v2005
    %2435 = vmatprep.subr.bf16.mxu0 %v2008
    %2436 = vmatpush1.bf16.msra.mxu0 %v2007
    %2437 = vmatprep.subr.bf16.mxu0 %v2010
    %2438 = vmatpush1.bf16.msra.mxu0 %v2009
    %2439 = vmatprep.subr.bf16.mxu0 %v2012
    %2440 = vmatpush1.bf16.msra.mxu0 %v2011
    %2441 = vmatprep.subr.bf16.mxu0 %v2014
    %2442 = vmatpush1.bf16.msra.mxu0 %v2013
    %2443 = vmatprep.subr.bf16.mxu0 %v2016
    %2444 = vmatpush1.bf16.msra.mxu0 %v2015
    %2445 = vmatprep.subr.bf16.mxu0 %v2018
    %2446 = vmatpush1.bf16.msra.mxu0 %v2017
    %2447 = vmatprep.subr.bf16.mxu0 %v2020
    %2448 = vmatpush1.bf16.msra.mxu0 %v2019
    %2449 = vmatprep.subr.bf16.mxu0 %v2022
    %2450 = vmatpush1.bf16.msra.mxu0 %v2021
    %2451 = vmatprep.subr.bf16.mxu0 %v2024
    %2452 = vmatpush1.bf16.msra.mxu0 %v2023
    %2453 = vmatprep.subr.bf16.mxu0 %v2026
    %2454 = vmatpush1.bf16.msra.mxu0 %v2025
    %2455 = vmatprep.mubr.bf16.mxu0 %v2364
    %2456 = vmatmul.mubr.bf16.gmra.mrb[0].mxu0 %v2363
    %v2457 = vpop.f32.mrb[0].mxu0
    %v2458 = vadd.f32 %v2236, %v2457
    %v2459 = vpop.f32.mrb[0].mxu0
    %v2460 = vadd.f32 %v2238, %v2459
    %v2461 = vpop.f32.mrb[0].mxu0
    %v2462 = vadd.f32 %v2240, %v2461
    %v2463 = vpop.f32.mrb[0].mxu0
    %v2464 = vadd.f32 %v2242, %v2463
    %2465 = vmatprep.mubr.bf16.mxu0 %v2370
    %2466 = vmatmul.mubr.bf16.gmra.mrb[0].mxu0 %v2369
    %v2467 = vpop.f32.mrb[0].mxu0
    %v2468 = vadd.f32 %v2246, %v2467
    %v2469 = vpop.f32.mrb[0].mxu0
    %v2470 = vadd.f32 %v2248, %v2469
    %v2471 = vpop.f32.mrb[0].mxu0
    %v2472 = vadd.f32 %v2250, %v2471
    %v2473 = vpop.f32.mrb[0].mxu0
    %v2474 = vadd.f32 %v2252, %v2473
    %2475 = vmatprep.mubr.bf16.mxu0 %v2376
    %2476 = vmatmul.mubr.bf16.gmra.mrb[0].mxu0 %v2375
    %v2477 = vpop.f32.mrb[0].mxu0
    %v2478 = vadd.f32 %v2256, %v2477
    %v2479 = vpop.f32.mrb[0].mxu0
    %v2480 = vadd.f32 %v2258, %v2479
    %v2481 = vpop.f32.mrb[0].mxu0
    %v2482 = vadd.f32 %v2260, %v2481
    %v2483 = vpop.f32.mrb[0].mxu0
    %v2484 = vadd.f32 %v2262, %v2483
    %2485 = vmatprep.mubr.bf16.mxu0 %v2382
    %2486 = vmatmul.mubr.bf16.gmra.mrb[0].mxu0 %v2381
    %v2487 = vpop.f32.mrb[0].mxu0
    %v2488 = vadd.f32 %v2266, %v2487
    %v2489 = vpop.f32.mrb[0].mxu0
    %v2490 = vadd.f32 %v2268, %v2489
    %v2491 = vpop.f32.mrb[0].mxu0
    %v2492 = vadd.f32 %v2270, %v2491
    %v2493 = vpop.f32.mrb[0].mxu0
    %v2494 = vadd.f32 %v2272, %v2493
    %2495 = vmatprep.mubr.bf16.mxu0 %v2388
    %2496 = vmatmul.mubr.bf16.gmra.mrb[0].mxu0 %v2387
    %v2497 = vpop.f32.mrb[0].mxu0
    %v2498 = vadd.f32 %v2276, %v2497
    %v2499 = vpop.f32.mrb[0].mxu0
    %v2500 = vadd.f32 %v2278, %v2499
    %v2501 = vpop.f32.mrb[0].mxu0
    %v2502 = vpop.f32.mrb[0].mxu0
    %2503 = vdwg.mxu0
    %2504 = vmatprep.subr.bf16.mxu0 %v2028
    %2505 = vmatpush1.bf16.msra.mxu0 %v2027
    %2506 = vmatprep.subr.bf16.mxu0 %v2030
    %2507 = vmatpush1.bf16.msra.mxu0 %v2029
    %2508 = vmatprep.subr.bf16.mxu0 %v2032
    %2509 = vmatpush1.bf16.msra.mxu0 %v2031
    %2510 = vmatprep.subr.bf16.mxu0 %v2034
    %2511 = vmatpush1.bf16.msra.mxu0 %v2033
    %2512 = vmatprep.subr.bf16.mxu0 %v2036
    %2513 = vmatpush1.bf16.msra.mxu0 %v2035
    %2514 = vmatprep.subr.bf16.mxu0 %v2038
    %2515 = vmatpush1.bf16.msra.mxu0 %v2037
    %2516 = vmatprep.subr.bf16.mxu0 %v2040
    %2517 = vmatpush1.bf16.msra.mxu0 %v2039
    %2518 = vmatprep.subr.bf16.mxu0 %v2042
    %2519 = vmatpush1.bf16.msra.mxu0 %v2041
    %2520 = vmatprep.subr.bf16.mxu0 %v2044
    %2521 = vmatpush1.bf16.msra.mxu0 %v2043
    %2522 = vmatprep.subr.bf16.mxu0 %v2046
    %2523 = vmatpush1.bf16.msra.mxu0 %v2045
    %2524 = vmatprep.subr.bf16.mxu0 %v2048
    %2525 = vmatpush1.bf16.msra.mxu0 %v2047
    %2526 = vmatprep.subr.bf16.mxu0 %v2050
    %2527 = vmatpush1.bf16.msra.mxu0 %v2049
    %2528 = vmatprep.subr.bf16.mxu0 %v2052
    %2529 = vmatpush1.bf16.msra.mxu0 %v2051
    %2530 = vmatprep.subr.bf16.mxu0 %v2054
    %2531 = vmatpush1.bf16.msra.mxu0 %v2053
    %2532 = vmatprep.subr.bf16.mxu0 %v2056
    %2533 = vmatpush1.bf16.msra.mxu0 %v2055
    %2534 = vmatprep.subr.bf16.mxu0 %v2058
    %2535 = vmatpush1.bf16.msra.mxu0 %v2057
    %2536 = vmatprep.mubr.bf16.mxu0 %v2366
    %2537 = vmatmul.mubr.bf16.gmra.mrb[0].mxu0 %v2365
    %v2538 = vpop.f32.mrb[0].mxu0
    %v2539 = vadd.f32 %v2458, %v2538
    %v2540 = vpop.f32.mrb[0].mxu0
    %v2541 = vadd.f32 %v2460, %v2540
    %v2542 = vpop.f32.mrb[0].mxu0
    %v2543 = vadd.f32 %v2462, %v2542
    %v2544 = vpop.f32.mrb[0].mxu0
    %v2545 = vadd.f32 %v2464, %v2544
    %2546 = vmatprep.mubr.bf16.mxu0 %v2372
    %2547 = vmatmul.mubr.bf16.gmra.mrb[0].mxu0 %v2371
    %v2548 = vpop.f32.mrb[0].mxu0
    %v2549 = vadd.f32 %v2468, %v2548
    %v2550 = vpop.f32.mrb[0].mxu0
    %v2551 = vadd.f32 %v2470, %v2550
    %v2552 = vpop.f32.mrb[0].mxu0
    %v2553 = vadd.f32 %v2472, %v2552
    %v2554 = vpop.f32.mrb[0].mxu0
    %v2555 = vadd.f32 %v2474, %v2554
    %2556 = vmatprep.mubr.bf16.mxu0 %v2378
    %2557 = vmatmul.mubr.bf16.gmra.mrb[0].mxu0 %v2377
    %v2558 = vpop.f32.mrb[0].mxu0
    %v2559 = vadd.f32 %v2478, %v2558
    %v2560 = vpop.f32.mrb[0].mxu0
    %v2561 = vadd.f32 %v2480, %v2560
    %v2562 = vpop.f32.mrb[0].mxu0
    %v2563 = vadd.f32 %v2482, %v2562
    %v2564 = vpop.f32.mrb[0].mxu0
    %v2565 = vadd.f32 %v2484, %v2564
    %2566 = vmatprep.mubr.bf16.mxu0 %v2384
    %2567 = vmatmul.mubr.bf16.gmra.mrb[0].mxu0 %v2383
    %v2568 = vpop.f32.mrb[0].mxu0
    %v2569 = vadd.f32 %v2488, %v2568
    %v2570 = vpop.f32.mrb[0].mxu0
    %v2571 = vadd.f32 %v2490, %v2570
    %v2572 = vpop.f32.mrb[0].mxu0
    %v2573 = vadd.f32 %v2492, %v2572
    %v2574 = vpop.f32.mrb[0].mxu0
    %v2575 = vadd.f32 %v2494, %v2574
    %2576 = vmatprep.mubr.bf16.mxu0 %v2390
    %2577 = vmatmul.mubr.bf16.gmra.mrb[0].mxu0 %v2389
    %v2578 = vpop.f32.mrb[0].mxu0
    %v2579 = vadd.f32 %v2498, %v2578
    %v2580 = vpop.f32.mrb[0].mxu0
    %v2581 = vadd.f32 %v2500, %v2580
    %v2582 = vpop.f32.mrb[0].mxu0
    %v2583 = vpop.f32.mrb[0].mxu0
    %2584 = vdwg.mxu0
    %2585 = vmatprep.subr.bf16.mxu0 %v2060
    %2586 = vmatpush1.bf16.msra.mxu0 %v2059
    %2587 = vmatprep.subr.bf16.mxu0 %v2062
    %2588 = vmatpush1.bf16.msra.mxu0 %v2061
    %2589 = vmatprep.subr.bf16.mxu0 %v2064
    %2590 = vmatpush1.bf16.msra.mxu0 %v2063
    %2591 = vmatprep.subr.bf16.mxu0 %v2066
    %2592 = vmatpush1.bf16.msra.mxu0 %v2065
    %2593 = vmatprep.subr.bf16.mxu0 %v2068
    %2594 = vmatpush1.bf16.msra.mxu0 %v2067
    %2595 = vmatprep.subr.bf16.mxu0 %v2070
    %2596 = vmatpush1.bf16.msra.mxu0 %v2069
    %2597 = vmatprep.subr.bf16.mxu0 %v2072
    %2598 = vmatpush1.bf16.msra.mxu0 %v2071
    %2599 = vmatprep.subr.bf16.mxu0 %v2074
    %2600 = vmatpush1.bf16.msra.mxu0 %v2073
    %2601 = vmatprep.subr.bf16.mxu0 %v2076
    %2602 = vmatpush1.bf16.msra.mxu0 %v2075
    %2603 = vmatprep.subr.bf16.mxu0 %v2078
    %2604 = vmatpush1.bf16.msra.mxu0 %v2077
    %2605 = vmatprep.subr.bf16.mxu0 %v2080
    %2606 = vmatpush1.bf16.msra.mxu0 %v2079
    %2607 = vmatprep.subr.bf16.mxu0 %v2082
    %2608 = vmatpush1.bf16.msra.mxu0 %v2081
    %2609 = vmatprep.subr.bf16.mxu0 %v2084
    %2610 = vmatpush1.bf16.msra.mxu0 %v2083
    %2611 = vmatprep.subr.bf16.mxu0 %v2086
    %2612 = vmatpush1.bf16.msra.mxu0 %v2085
    %2613 = vmatprep.subr.bf16.mxu0 %v2088
    %2614 = vmatpush1.bf16.msra.mxu0 %v2087
    %2615 = vmatprep.subr.bf16.mxu0 %v2090
    %2616 = vmatpush1.bf16.msra.mxu0 %v2089
    %2617 = vmatprep.mubr.bf16.mxu0 %v2368
    %2618 = vmatmul.mubr.bf16.gmra.mrb[0].mxu0 %v2367
    %v2619 = vpop.f32.mrb[0].mxu0
    %v2620 = vadd.f32 %v2539, %v2619
    %v2621 = vpop.f32.mrb[0].mxu0
    %v2622 = vadd.f32 %v2541, %v2621
    %v2623 = vpop.f32.mrb[0].mxu0
    %v2624 = vadd.f32 %v2543, %v2623
    %v2625 = vpop.f32.mrb[0].mxu0
    %v2626 = vadd.f32 %v2545, %v2625
    %2627 = vmatprep.mubr.bf16.mxu0 %v2374
    %2628 = vmatmul.mubr.bf16.gmra.mrb[0].mxu0 %v2373
    %v2629 = vpop.f32.mrb[0].mxu0
    %v2630 = vadd.f32 %v2549, %v2629
    %v2631 = vpop.f32.mrb[0].mxu0
    %v2632 = vadd.f32 %v2551, %v2631
    %v2633 = vpop.f32.mrb[0].mxu0
    %v2634 = vadd.f32 %v2553, %v2633
    %v2635 = vpop.f32.mrb[0].mxu0
    %v2636 = vadd.f32 %v2555, %v2635
    %2637 = vmatprep.mubr.bf16.mxu0 %v2380
    %2638 = vmatmul.mubr.bf16.gmra.mrb[0].mxu0 %v2379
    %v2639 = vpop.f32.mrb[0].mxu0
    %v2640 = vadd.f32 %v2559, %v2639
    %v2641 = vpop.f32.mrb[0].mxu0
    %v2642 = vadd.f32 %v2561, %v2641
    %v2643 = vpop.f32.mrb[0].mxu0
    %v2644 = vadd.f32 %v2563, %v2643
    %v2645 = vpop.f32.mrb[0].mxu0
    %v2646 = vadd.f32 %v2565, %v2645
    %2647 = vmatprep.mubr.bf16.mxu0 %v2386
    %2648 = vmatmul.mubr.bf16.gmra.mrb[0].mxu0 %v2385
    %v2649 = vpop.f32.mrb[0].mxu0
    %v2650 = vadd.f32 %v2569, %v2649
    %v2651 = vpop.f32.mrb[0].mxu0
    %v2652 = vadd.f32 %v2571, %v2651
    %v2653 = vpop.f32.mrb[0].mxu0
    %v2654 = vadd.f32 %v2573, %v2653
    %v2655 = vpop.f32.mrb[0].mxu0
    %v2656 = vadd.f32 %v2575, %v2655
    %2657 = vmatprep.mubr.bf16.mxu0 %v2392
    %2658 = vmatmul.mubr.bf16.gmra.mrb[0].mxu0 %v2391
    %v2659 = vpop.f32.mrb[0].mxu0
    %v2660 = vadd.f32 %v2579, %v2659
    %v2661 = vpop.f32.mrb[0].mxu0
    %v2662 = vadd.f32 %v2581, %v2661
    %v2663 = vpop.f32.mrb[0].mxu0
    %v2664 = vpop.f32.mrb[0].mxu0
    %2665 = vdwg.mxu0
    %v2666 = vld [vmem:[%s6] sm:$0x3]
    %v2668 = vlaneseq
    %v2669 = vshrl.u32 %v2668, 7
    %v2670 = vsub.s32 0, %v2669
    %v2671 = vrot.slane %v2666, %v2670
    %v2672 = vlaneseq
    %v2673 = vshrl.u32 %v2672, 7
    %v2674 = vsub.s32 1, %v2673
    %v2675 = vrot.slane %v2666, %v2674
    %v2678 = vadd.f32 %v2620, %v2671
    %v2679 = vadd.f32 %v2622, %v2675
    %v2680 = vadd.f32 %v2624, %v2671
    %v2681 = vadd.f32 %v2626, %v2675
    %v2682 = vadd.f32 %v2630, %v2671
    %v2683 = vadd.f32 %v2632, %v2675
    %v2684 = vadd.f32 %v2634, %v2671
    %v2685 = vadd.f32 %v2636, %v2675
    %v2686 = vadd.f32 %v2640, %v2671
    %v2687 = vadd.f32 %v2642, %v2675
    %v2688 = vadd.f32 %v2644, %v2671
    %v2689 = vadd.f32 %v2646, %v2675
    %v2690 = vadd.f32 %v2650, %v2671
    %v2691 = vadd.f32 %v2652, %v2675
    %v2692 = vadd.f32 %v2654, %v2671
    %v2693 = vadd.f32 %v2656, %v2675
    %v2694 = vadd.f32 %v2660, %v2671
    %v2695 = vadd.f32 %v2662, %v2675
    %v2696 = vld [vmem:[%s7] sm:$0x3]
    %v2698 = vlaneseq
    %v2699 = vshrl.u32 %v2698, 7
    %v2700 = vsub.s32 0, %v2699
    %v2701 = vrot.slane %v2696, %v2700
    %v2702 = vlaneseq
    %v2703 = vshrl.u32 %v2702, 7
    %v2704 = vsub.s32 1, %v2703
    %v2705 = vrot.slane %v2696, %v2704
    %v2708 = vadd.f32 %v2678, %v2701
    %v2709 = vadd.f32 %v2679, %v2705
    %v2710 = vadd.f32 %v2680, %v2701
    %v2711 = vadd.f32 %v2681, %v2705
    %v2712 = vadd.f32 %v2682, %v2701
    %v2713 = vadd.f32 %v2683, %v2705
    %v2714 = vadd.f32 %v2684, %v2701
    %v2715 = vadd.f32 %v2685, %v2705
    %v2716 = vadd.f32 %v2686, %v2701
    %v2717 = vadd.f32 %v2687, %v2705
    %v2718 = vadd.f32 %v2688, %v2701
    %v2719 = vadd.f32 %v2689, %v2705
    %v2720 = vadd.f32 %v2690, %v2701
    %v2721 = vadd.f32 %v2691, %v2705
    %v2722 = vadd.f32 %v2692, %v2701
    %v2723 = vadd.f32 %v2693, %v2705
    %v2724 = vadd.f32 %v2694, %v2701
    %v2725 = vadd.f32 %v2695, %v2705
    %2726 = vst [vmem:[#allocation11] sm:$0xff] %v2708
    %2727 = vst [vmem:[#allocation11 + $0x8] sm:$0xff] %v2709
    %2728 = vst [vmem:[#allocation11 + $0x10] sm:$0xff] %v2710
    %2729 = vst [vmem:[#allocation11 + $0x18] sm:$0xff] %v2711
    %2730 = vst [vmem:[#allocation11 + $0x20] sm:$0xff] %v2712
    %2731 = vst [vmem:[#allocation11 + $0x28] sm:$0xff] %v2713
    %2732 = vst [vmem:[#allocation11 + $0x30] sm:$0xff] %v2714
    %2733 = vst [vmem:[#allocation11 + $0x38] sm:$0xff] %v2715
    %2734 = vst [vmem:[#allocation11 + $0x40] sm:$0xff] %v2716
    %2735 = vst [vmem:[#allocation11 + $0x48] sm:$0xff] %v2717
    %2736 = vst [vmem:[#allocation11 + $0x50] sm:$0xff] %v2718
    %2737 = vst [vmem:[#allocation11 + $0x58] sm:$0xff] %v2719
    %2738 = vst [vmem:[#allocation11 + $0x60] sm:$0xff] %v2720
    %2739 = vst [vmem:[#allocation11 + $0x68] sm:$0xff] %v2721
    %2740 = vst [vmem:[#allocation11 + $0x70] sm:$0xff] %v2722
    %2741 = vst [vmem:[#allocation11 + $0x78] sm:$0xff] %v2723
    %2742 = vst [vmem:[#allocation11 + $0x80] sm:$0xf] %v2724
    %2743 = vst [vmem:[#allocation11 + $0x88] sm:$0xf] %v2725
    // Predicated region
    $region54: #{tpu_custom_call.1} parent=1 // pred_check
      _
    $region55: #{tpu_custom_call.1} parent=1 // pred_check_branch
      %2745 = sbr.rel (0) target = $region57
    $region56: #{tpu_custom_call.1} parent=1 // pred_region
      %s2747 = ssub.s32 2304, 2304
      %2748 = vsyncadd [#allocation10], %s2747
      %s2749 = sshll.u32 [#allocation11], 4
      %s2750 = int_to_ptr.vmem [resolvable:$true] %s2749
      %2755 = dma.vmem_to_hbm [thread:$0]  %s2750, 2304, %s13, [#allocation10], 256, 256, 16
    $region57: #{tpu_custom_call.1} parent=1 // pred_fallthru
      _
    // Predicated region
    $region58: #{tpu_custom_call.1} parent=1 // pred_check
      _
    $region59: #{tpu_custom_call.1} parent=1 // pred_check_branch
      %2757 = sbr.rel (0) target = $region61
    $region60: #{tpu_custom_call.1} parent=1 // pred_region
      %2758 = dma.done [#allocation10], 2304
    $region61: #{tpu_custom_call.1} parent=1 // pred_fallthru
      _
    %2759 = vsyncpa [#allocation9], 1
    %2760 = vsyncpa [#allocation10], 1
  %2761 = vsyncmov [#allocation7]
  %s2762 = vpop.sfrf %2761
  %p2763 = scmp.eq.s32.totalorder %s2762, 0
  %p2764 = pneg %p2763
  %2766 = shalt.err (%p2764)

</llo_original>
